<compile_context>
chip_gen: v5e
topology: v5e:2x2
jax: 0.10.0
libtpu: 0.0.40
codegen_flags: <defaults>
</compile_context>

<pallas_src>
import jax
import jax.numpy as jnp
from jax.experimental import pallas as pl
from jax.experimental.pallas import tpu as pltpu

HIDDEN = 32       # global_cfg.j_coupling_hidden_dim
LANES = 128       # vreg lane width; N is laid out along lanes
TILE_ROWS = 1024  # rows (of 128 lanes each) per grid step -> 512 KiB f32 tile


def _coupling_kernel(w1_ref, b1_ref, wf_ref, bf_ref, x_ref, o_ref):
    # x_ref / o_ref: (tile_rows, 128) f32 in VMEM (lane-dense distances).
    # w1_ref, b1_ref, wf_ref: (H,) f32 in SMEM; bf_ref: (1,) f32 in SMEM.
    x = x_ref[...]
    acc = jnp.zeros_like(x)
    for h in range(HIDDEN):                    # static unroll; VPU + EUP only
        pre = x * w1_ref[h] + b1_ref[h]        # Linear(1->H), unit h
        acc = acc + (pre * jax.nn.sigmoid(pre)) * wf_ref[h]   # SiLU * fused W
    o_ref[...] = acc + bf_ref[0]               # fused bias


def coupling_output_layer(distance, params):
    """distance: [N, 1] float32. Returns [N, 1] float32."""
    w1, b1, w2, b2, w3, b3 = params
    N = distance.shape[0]

    # Fold Linear(H->H) o Linear(H->1) outside the kernel (exact).
    w_fused = (w2 @ w3).reshape(HIDDEN).astype(jnp.float32)   # [H]
    b_fused = (b2 @ w3 + b3).reshape(1).astype(jnp.float32)   # [1]
    w1v = w1.reshape(HIDDEN).astype(jnp.float32)              # [H]
    b1v = b1.reshape(HIDDEN).astype(jnp.float32)              # [H]

    # Lane-dense layout: [N] -> [rows_pad, 128], padded with zeros.
    rows = -(-N // LANES)
    tile_rows = TILE_ROWS if rows >= TILE_ROWS else rows
    grid_n = -(-rows // tile_rows)
    rows_pad = grid_n * tile_rows
    n_pad = rows_pad * LANES

    x_flat = distance.reshape(N).astype(jnp.float32)
    x2d = jnp.zeros((n_pad,), jnp.float32).at[:N].set(x_flat)
    x2d = x2d.reshape(rows_pad, LANES)

    smem_spec = pl.BlockSpec(memory_space=pltpu.MemorySpace.SMEM)
    out2d = pl.pallas_call(
        _coupling_kernel,
        out_shape=jax.ShapeDtypeStruct((rows_pad, LANES), jnp.float32),
        grid=(grid_n,),
        in_specs=[
            smem_spec,                                        # w1   [H]
            smem_spec,                                        # b1   [H]
            smem_spec,                                        # w_f  [H]
            smem_spec,                                        # b_f  [1]
            pl.BlockSpec((tile_rows, LANES), lambda i: (i, 0)),  # distances
        ],
        out_specs=pl.BlockSpec((tile_rows, LANES), lambda i: (i, 0)),
        compiler_params=pltpu.CompilerParams(
            dimension_semantics=("parallel",)),               # megacore on v7x
        cost_estimate=pl.CostEstimate(
            flops=5 * n_pad * HIDDEN,
            transcendentals=n_pad * HIDDEN,
            bytes_accessed=8 * n_pad),
    )(w1v, b1v, w_fused, b_fused, x2d)

    return out2d.reshape(n_pad)[:N].reshape(N, 1)


def init_params(key, hidden=HIDDEN):
    k1, k2, k3, k4, k5, k6 = jax.random.split(key, 6)
    # deterministic, PyTorch-Linear-like scale (uniform(-1/sqrt(fan_in), ...))
    def u(k, shape, fan_in):
        lim = 1.0 / jnp.sqrt(jnp.float32(fan_in))
        return jax.random.uniform(k, shape, jnp.float32, -lim, lim)
    w1 = u(k1, (1, hidden), 1)
    b1 = u(k2, (1, hidden), 1)
    w2 = u(k3, (hidden, hidden), hidden)
    b2 = u(k4, (1, hidden), hidden)
    w3 = u(k5, (hidden, 1), hidden)
    b3 = u(k6, (1, 1), hidden)
    return (w1, b1, w2, b2, w3, b3)


def reference(distance, params):
    w1, b1, w2, b2, w3, b3 = params
    h = distance @ w1 + b1
    h = h * jax.nn.sigmoid(h)          # SiLU
    h = h @ w2 + b2
    return h @ w3 + b3


if __name__ == "__main__":
    key = jax.random.PRNGKey(0)
    kx, kp = jax.random.split(key)
    N = 2000  # number of atom-pair distances (exercises lane padding path)
    distance = jax.random.uniform(kx, (N, 1), jnp.float32, 0.5, 5.0)
    params = init_params(kp)

    out = coupling_output_layer(distance, params)
    out = jax.block_until_ready(out)

    ref = reference(distance, params)
    assert out.shape == (N, 1)
    # w2@w3 fusion reassociates float sums -> allow ~1e-5 slack vs reference.
    assert jnp.allclose(out, ref, atol=5e-5, rtol=5e-5), "mismatch vs reference"
    print("KERNEL_OK")
</pallas_src>

<mosaic_0001>
module attributes {stable_mosaic.version = 11 : i64} {
  func.func @_coupling_kernel(%arg0: i32, %arg1: memref<32xf32, #tpu.memory_space<smem>>, %arg2: memref<32xf32, #tpu.memory_space<smem>>, %arg3: memref<32xf32, #tpu.memory_space<smem>>, %arg4: memref<1xf32, #tpu.memory_space<smem>>, %arg5: memref<16x128xf32, #tpu.memory_space<vmem>>, %arg6: memref<16x128xf32, #tpu.memory_space<vmem>>) attributes {dimension_semantics = [#tpu.dimension_semantics<parallel>], iteration_bounds = array<i64: 1>, scalar_prefetch = 0 : i64, scratch_operands = 0 : i64, tpu.core_type = #tpu.core_type<tc>, window_params = [{transform_indices = @transform_0, window_bounds = array<i64: 32>}, {transform_indices = @transform_1, window_bounds = array<i64: 32>}, {transform_indices = @transform_2, window_bounds = array<i64: 32>}, {transform_indices = @transform_3, window_bounds = array<i64: 1>}, {transform_indices = @transform_4, window_bounds = array<i64: 16, 128>}, {transform_indices = @transform_5, window_bounds = array<i64: 16, 128>}]} {
    %c0 = arith.constant 0 : index
    %c0_0 = arith.constant 0 : index
    %0 = vector.load %arg5[%c0, %c0_0] : memref<16x128xf32, #tpu.memory_space<vmem>>, vector<16x128xf32>
    %cst = arith.constant 0.000000e+00 : f32
    %1 = vector.broadcast %cst : f32 to vector<16x128xf32>
    %c0_1 = arith.constant 0 : index
    %2 = memref.load %arg1[%c0_1] : memref<32xf32, #tpu.memory_space<smem>>
    %3 = vector.broadcast %2 : f32 to vector<16x128xf32>
    %4 = arith.mulf %0, %3 : vector<16x128xf32>
    %c0_2 = arith.constant 0 : index
    %5 = memref.load %arg2[%c0_2] : memref<32xf32, #tpu.memory_space<smem>>
    %6 = vector.broadcast %5 : f32 to vector<16x128xf32>
    %7 = arith.addf %4, %6 : vector<16x128xf32>
    %8 = arith.negf %7 : vector<16x128xf32>
    %9 = math.exp %8 : vector<16x128xf32>
    %cst_3 = arith.constant 1.000000e+00 : f32
    %10 = vector.broadcast %cst_3 : f32 to vector<16x128xf32>
    %11 = arith.addf %10, %9 : vector<16x128xf32>
    %12 = arith.divf %10, %11 : vector<16x128xf32>
    %13 = arith.mulf %7, %12 : vector<16x128xf32>
    %c0_4 = arith.constant 0 : index
    %14 = memref.load %arg3[%c0_4] : memref<32xf32, #tpu.memory_space<smem>>
    %15 = vector.broadcast %14 : f32 to vector<16x128xf32>
    %16 = arith.mulf %13, %15 : vector<16x128xf32>
    %17 = arith.addf %1, %16 : vector<16x128xf32>
    %c1 = arith.constant 1 : index
    %18 = memref.load %arg1[%c1] : memref<32xf32, #tpu.memory_space<smem>>
    %19 = vector.broadcast %18 : f32 to vector<16x128xf32>
    %20 = arith.mulf %0, %19 : vector<16x128xf32>
    %c1_5 = arith.constant 1 : index
    %21 = memref.load %arg2[%c1_5] : memref<32xf32, #tpu.memory_space<smem>>
    %22 = vector.broadcast %21 : f32 to vector<16x128xf32>
    %23 = arith.addf %20, %22 : vector<16x128xf32>
    %24 = arith.negf %23 : vector<16x128xf32>
    %25 = math.exp %24 : vector<16x128xf32>
    %cst_6 = arith.constant 1.000000e+00 : f32
    %26 = vector.broadcast %cst_6 : f32 to vector<16x128xf32>
    %27 = arith.addf %26, %25 : vector<16x128xf32>
    %28 = arith.divf %26, %27 : vector<16x128xf32>
    %29 = arith.mulf %23, %28 : vector<16x128xf32>
    %c1_7 = arith.constant 1 : index
    %30 = memref.load %arg3[%c1_7] : memref<32xf32, #tpu.memory_space<smem>>
    %31 = vector.broadcast %30 : f32 to vector<16x128xf32>
    %32 = arith.mulf %29, %31 : vector<16x128xf32>
    %33 = arith.addf %17, %32 : vector<16x128xf32>
    %c2 = arith.constant 2 : index
    %34 = memref.load %arg1[%c2] : memref<32xf32, #tpu.memory_space<smem>>
    %35 = vector.broadcast %34 : f32 to vector<16x128xf32>
    %36 = arith.mulf %0, %35 : vector<16x128xf32>
    %c2_8 = arith.constant 2 : index
    %37 = memref.load %arg2[%c2_8] : memref<32xf32, #tpu.memory_space<smem>>
    %38 = vector.broadcast %37 : f32 to vector<16x128xf32>
    %39 = arith.addf %36, %38 : vector<16x128xf32>
    %40 = arith.negf %39 : vector<16x128xf32>
    %41 = math.exp %40 : vector<16x128xf32>
    %cst_9 = arith.constant 1.000000e+00 : f32
    %42 = vector.broadcast %cst_9 : f32 to vector<16x128xf32>
    %43 = arith.addf %42, %41 : vector<16x128xf32>
    %44 = arith.divf %42, %43 : vector<16x128xf32>
    %45 = arith.mulf %39, %44 : vector<16x128xf32>
    %c2_10 = arith.constant 2 : index
    %46 = memref.load %arg3[%c2_10] : memref<32xf32, #tpu.memory_space<smem>>
    %47 = vector.broadcast %46 : f32 to vector<16x128xf32>
    %48 = arith.mulf %45, %47 : vector<16x128xf32>
    %49 = arith.addf %33, %48 : vector<16x128xf32>
    %c3 = arith.constant 3 : index
    %50 = memref.load %arg1[%c3] : memref<32xf32, #tpu.memory_space<smem>>
    %51 = vector.broadcast %50 : f32 to vector<16x128xf32>
    %52 = arith.mulf %0, %51 : vector<16x128xf32>
    %c3_11 = arith.constant 3 : index
    %53 = memref.load %arg2[%c3_11] : memref<32xf32, #tpu.memory_space<smem>>
    %54 = vector.broadcast %53 : f32 to vector<16x128xf32>
    %55 = arith.addf %52, %54 : vector<16x128xf32>
    %56 = arith.negf %55 : vector<16x128xf32>
    %57 = math.exp %56 : vector<16x128xf32>
    %cst_12 = arith.constant 1.000000e+00 : f32
    %58 = vector.broadcast %cst_12 : f32 to vector<16x128xf32>
    %59 = arith.addf %58, %57 : vector<16x128xf32>
    %60 = arith.divf %58, %59 : vector<16x128xf32>
    %61 = arith.mulf %55, %60 : vector<16x128xf32>
    %c3_13 = arith.constant 3 : index
    %62 = memref.load %arg3[%c3_13] : memref<32xf32, #tpu.memory_space<smem>>
    %63 = vector.broadcast %62 : f32 to vector<16x128xf32>
    %64 = arith.mulf %61, %63 : vector<16x128xf32>
    %65 = arith.addf %49, %64 : vector<16x128xf32>
    %c4 = arith.constant 4 : index
    %66 = memref.load %arg1[%c4] : memref<32xf32, #tpu.memory_space<smem>>
    %67 = vector.broadcast %66 : f32 to vector<16x128xf32>
    %68 = arith.mulf %0, %67 : vector<16x128xf32>
    %c4_14 = arith.constant 4 : index
    %69 = memref.load %arg2[%c4_14] : memref<32xf32, #tpu.memory_space<smem>>
    %70 = vector.broadcast %69 : f32 to vector<16x128xf32>
    %71 = arith.addf %68, %70 : vector<16x128xf32>
    %72 = arith.negf %71 : vector<16x128xf32>
    %73 = math.exp %72 : vector<16x128xf32>
    %cst_15 = arith.constant 1.000000e+00 : f32
    %74 = vector.broadcast %cst_15 : f32 to vector<16x128xf32>
    %75 = arith.addf %74, %73 : vector<16x128xf32>
    %76 = arith.divf %74, %75 : vector<16x128xf32>
    %77 = arith.mulf %71, %76 : vector<16x128xf32>
    %c4_16 = arith.constant 4 : index
    %78 = memref.load %arg3[%c4_16] : memref<32xf32, #tpu.memory_space<smem>>
    %79 = vector.broadcast %78 : f32 to vector<16x128xf32>
    %80 = arith.mulf %77, %79 : vector<16x128xf32>
    %81 = arith.addf %65, %80 : vector<16x128xf32>
    %c5 = arith.constant 5 : index
    %82 = memref.load %arg1[%c5] : memref<32xf32, #tpu.memory_space<smem>>
    %83 = vector.broadcast %82 : f32 to vector<16x128xf32>
    %84 = arith.mulf %0, %83 : vector<16x128xf32>
    %c5_17 = arith.constant 5 : index
    %85 = memref.load %arg2[%c5_17] : memref<32xf32, #tpu.memory_space<smem>>
    %86 = vector.broadcast %85 : f32 to vector<16x128xf32>
    %87 = arith.addf %84, %86 : vector<16x128xf32>
    %88 = arith.negf %87 : vector<16x128xf32>
    %89 = math.exp %88 : vector<16x128xf32>
    %cst_18 = arith.constant 1.000000e+00 : f32
    %90 = vector.broadcast %cst_18 : f32 to vector<16x128xf32>
    %91 = arith.addf %90, %89 : vector<16x128xf32>
    %92 = arith.divf %90, %91 : vector<16x128xf32>
    %93 = arith.mulf %87, %92 : vector<16x128xf32>
    %c5_19 = arith.constant 5 : index
    %94 = memref.load %arg3[%c5_19] : memref<32xf32, #tpu.memory_space<smem>>
    %95 = vector.broadcast %94 : f32 to vector<16x128xf32>
    %96 = arith.mulf %93, %95 : vector<16x128xf32>
    %97 = arith.addf %81, %96 : vector<16x128xf32>
    %c6 = arith.constant 6 : index
    %98 = memref.load %arg1[%c6] : memref<32xf32, #tpu.memory_space<smem>>
    %99 = vector.broadcast %98 : f32 to vector<16x128xf32>
    %100 = arith.mulf %0, %99 : vector<16x128xf32>
    %c6_20 = arith.constant 6 : index
    %101 = memref.load %arg2[%c6_20] : memref<32xf32, #tpu.memory_space<smem>>
    %102 = vector.broadcast %101 : f32 to vector<16x128xf32>
    %103 = arith.addf %100, %102 : vector<16x128xf32>
    %104 = arith.negf %103 : vector<16x128xf32>
    %105 = math.exp %104 : vector<16x128xf32>
    %cst_21 = arith.constant 1.000000e+00 : f32
    %106 = vector.broadcast %cst_21 : f32 to vector<16x128xf32>
    %107 = arith.addf %106, %105 : vector<16x128xf32>
    %108 = arith.divf %106, %107 : vector<16x128xf32>
    %109 = arith.mulf %103, %108 : vector<16x128xf32>
    %c6_22 = arith.constant 6 : index
    %110 = memref.load %arg3[%c6_22] : memref<32xf32, #tpu.memory_space<smem>>
    %111 = vector.broadcast %110 : f32 to vector<16x128xf32>
    %112 = arith.mulf %109, %111 : vector<16x128xf32>
    %113 = arith.addf %97, %112 : vector<16x128xf32>
    %c7 = arith.constant 7 : index
    %114 = memref.load %arg1[%c7] : memref<32xf32, #tpu.memory_space<smem>>
    %115 = vector.broadcast %114 : f32 to vector<16x128xf32>
    %116 = arith.mulf %0, %115 : vector<16x128xf32>
    %c7_23 = arith.constant 7 : index
    %117 = memref.load %arg2[%c7_23] : memref<32xf32, #tpu.memory_space<smem>>
    %118 = vector.broadcast %117 : f32 to vector<16x128xf32>
    %119 = arith.addf %116, %118 : vector<16x128xf32>
    %120 = arith.negf %119 : vector<16x128xf32>
    %121 = math.exp %120 : vector<16x128xf32>
    %cst_24 = arith.constant 1.000000e+00 : f32
    %122 = vector.broadcast %cst_24 : f32 to vector<16x128xf32>
    %123 = arith.addf %122, %121 : vector<16x128xf32>
    %124 = arith.divf %122, %123 : vector<16x128xf32>
    %125 = arith.mulf %119, %124 : vector<16x128xf32>
    %c7_25 = arith.constant 7 : index
    %126 = memref.load %arg3[%c7_25] : memref<32xf32, #tpu.memory_space<smem>>
    %127 = vector.broadcast %126 : f32 to vector<16x128xf32>
    %128 = arith.mulf %125, %127 : vector<16x128xf32>
    %129 = arith.addf %113, %128 : vector<16x128xf32>
    %c8 = arith.constant 8 : index
    %130 = memref.load %arg1[%c8] : memref<32xf32, #tpu.memory_space<smem>>
    %131 = vector.broadcast %130 : f32 to vector<16x128xf32>
    %132 = arith.mulf %0, %131 : vector<16x128xf32>
    %c8_26 = arith.constant 8 : index
    %133 = memref.load %arg2[%c8_26] : memref<32xf32, #tpu.memory_space<smem>>
    %134 = vector.broadcast %133 : f32 to vector<16x128xf32>
    %135 = arith.addf %132, %134 : vector<16x128xf32>
    %136 = arith.negf %135 : vector<16x128xf32>
    %137 = math.exp %136 : vector<16x128xf32>
    %cst_27 = arith.constant 1.000000e+00 : f32
    %138 = vector.broadcast %cst_27 : f32 to vector<16x128xf32>
    %139 = arith.addf %138, %137 : vector<16x128xf32>
    %140 = arith.divf %138, %139 : vector<16x128xf32>
    %141 = arith.mulf %135, %140 : vector<16x128xf32>
    %c8_28 = arith.constant 8 : index
    %142 = memref.load %arg3[%c8_28] : memref<32xf32, #tpu.memory_space<smem>>
    %143 = vector.broadcast %142 : f32 to vector<16x128xf32>
    %144 = arith.mulf %141, %143 : vector<16x128xf32>
    %145 = arith.addf %129, %144 : vector<16x128xf32>
    %c9 = arith.constant 9 : index
    %146 = memref.load %arg1[%c9] : memref<32xf32, #tpu.memory_space<smem>>
    %147 = vector.broadcast %146 : f32 to vector<16x128xf32>
    %148 = arith.mulf %0, %147 : vector<16x128xf32>
    %c9_29 = arith.constant 9 : index
    %149 = memref.load %arg2[%c9_29] : memref<32xf32, #tpu.memory_space<smem>>
    %150 = vector.broadcast %149 : f32 to vector<16x128xf32>
    %151 = arith.addf %148, %150 : vector<16x128xf32>
    %152 = arith.negf %151 : vector<16x128xf32>
    %153 = math.exp %152 : vector<16x128xf32>
    %cst_30 = arith.constant 1.000000e+00 : f32
    %154 = vector.broadcast %cst_30 : f32 to vector<16x128xf32>
    %155 = arith.addf %154, %153 : vector<16x128xf32>
    %156 = arith.divf %154, %155 : vector<16x128xf32>
    %157 = arith.mulf %151, %156 : vector<16x128xf32>
    %c9_31 = arith.constant 9 : index
    %158 = memref.load %arg3[%c9_31] : memref<32xf32, #tpu.memory_space<smem>>
    %159 = vector.broadcast %158 : f32 to vector<16x128xf32>
    %160 = arith.mulf %157, %159 : vector<16x128xf32>
    %161 = arith.addf %145, %160 : vector<16x128xf32>
    %c10 = arith.constant 10 : index
    %162 = memref.load %arg1[%c10] : memref<32xf32, #tpu.memory_space<smem>>
    %163 = vector.broadcast %162 : f32 to vector<16x128xf32>
    %164 = arith.mulf %0, %163 : vector<16x128xf32>
    %c10_32 = arith.constant 10 : index
    %165 = memref.load %arg2[%c10_32] : memref<32xf32, #tpu.memory_space<smem>>
    %166 = vector.broadcast %165 : f32 to vector<16x128xf32>
    %167 = arith.addf %164, %166 : vector<16x128xf32>
    %168 = arith.negf %167 : vector<16x128xf32>
    %169 = math.exp %168 : vector<16x128xf32>
    %cst_33 = arith.constant 1.000000e+00 : f32
    %170 = vector.broadcast %cst_33 : f32 to vector<16x128xf32>
    %171 = arith.addf %170, %169 : vector<16x128xf32>
    %172 = arith.divf %170, %171 : vector<16x128xf32>
    %173 = arith.mulf %167, %172 : vector<16x128xf32>
    %c10_34 = arith.constant 10 : index
    %174 = memref.load %arg3[%c10_34] : memref<32xf32, #tpu.memory_space<smem>>
    %175 = vector.broadcast %174 : f32 to vector<16x128xf32>
    %176 = arith.mulf %173, %175 : vector<16x128xf32>
    %177 = arith.addf %161, %176 : vector<16x128xf32>
    %c11 = arith.constant 11 : index
    %178 = memref.load %arg1[%c11] : memref<32xf32, #tpu.memory_space<smem>>
    %179 = vector.broadcast %178 : f32 to vector<16x128xf32>
    %180 = arith.mulf %0, %179 : vector<16x128xf32>
    %c11_35 = arith.constant 11 : index
    %181 = memref.load %arg2[%c11_35] : memref<32xf32, #tpu.memory_space<smem>>
    %182 = vector.broadcast %181 : f32 to vector<16x128xf32>
    %183 = arith.addf %180, %182 : vector<16x128xf32>
    %184 = arith.negf %183 : vector<16x128xf32>
    %185 = math.exp %184 : vector<16x128xf32>
    %cst_36 = arith.constant 1.000000e+00 : f32
    %186 = vector.broadcast %cst_36 : f32 to vector<16x128xf32>
    %187 = arith.addf %186, %185 : vector<16x128xf32>
    %188 = arith.divf %186, %187 : vector<16x128xf32>
    %189 = arith.mulf %183, %188 : vector<16x128xf32>
    %c11_37 = arith.constant 11 : index
    %190 = memref.load %arg3[%c11_37] : memref<32xf32, #tpu.memory_space<smem>>
    %191 = vector.broadcast %190 : f32 to vector<16x128xf32>
    %192 = arith.mulf %189, %191 : vector<16x128xf32>
    %193 = arith.addf %177, %192 : vector<16x128xf32>
    %c12 = arith.constant 12 : index
    %194 = memref.load %arg1[%c12] : memref<32xf32, #tpu.memory_space<smem>>
    %195 = vector.broadcast %194 : f32 to vector<16x128xf32>
    %196 = arith.mulf %0, %195 : vector<16x128xf32>
    %c12_38 = arith.constant 12 : index
    %197 = memref.load %arg2[%c12_38] : memref<32xf32, #tpu.memory_space<smem>>
    %198 = vector.broadcast %197 : f32 to vector<16x128xf32>
    %199 = arith.addf %196, %198 : vector<16x128xf32>
    %200 = arith.negf %199 : vector<16x128xf32>
    %201 = math.exp %200 : vector<16x128xf32>
    %cst_39 = arith.constant 1.000000e+00 : f32
    %202 = vector.broadcast %cst_39 : f32 to vector<16x128xf32>
    %203 = arith.addf %202, %201 : vector<16x128xf32>
    %204 = arith.divf %202, %203 : vector<16x128xf32>
    %205 = arith.mulf %199, %204 : vector<16x128xf32>
    %c12_40 = arith.constant 12 : index
    %206 = memref.load %arg3[%c12_40] : memref<32xf32, #tpu.memory_space<smem>>
    %207 = vector.broadcast %206 : f32 to vector<16x128xf32>
    %208 = arith.mulf %205, %207 : vector<16x128xf32>
    %209 = arith.addf %193, %208 : vector<16x128xf32>
    %c13 = arith.constant 13 : index
    %210 = memref.load %arg1[%c13] : memref<32xf32, #tpu.memory_space<smem>>
    %211 = vector.broadcast %210 : f32 to vector<16x128xf32>
    %212 = arith.mulf %0, %211 : vector<16x128xf32>
    %c13_41 = arith.constant 13 : index
    %213 = memref.load %arg2[%c13_41] : memref<32xf32, #tpu.memory_space<smem>>
    %214 = vector.broadcast %213 : f32 to vector<16x128xf32>
    %215 = arith.addf %212, %214 : vector<16x128xf32>
    %216 = arith.negf %215 : vector<16x128xf32>
    %217 = math.exp %216 : vector<16x128xf32>
    %cst_42 = arith.constant 1.000000e+00 : f32
    %218 = vector.broadcast %cst_42 : f32 to vector<16x128xf32>
    %219 = arith.addf %218, %217 : vector<16x128xf32>
    %220 = arith.divf %218, %219 : vector<16x128xf32>
    %221 = arith.mulf %215, %220 : vector<16x128xf32>
    %c13_43 = arith.constant 13 : index
    %222 = memref.load %arg3[%c13_43] : memref<32xf32, #tpu.memory_space<smem>>
    %223 = vector.broadcast %222 : f32 to vector<16x128xf32>
    %224 = arith.mulf %221, %223 : vector<16x128xf32>
    %225 = arith.addf %209, %224 : vector<16x128xf32>
    %c14 = arith.constant 14 : index
    %226 = memref.load %arg1[%c14] : memref<32xf32, #tpu.memory_space<smem>>
    %227 = vector.broadcast %226 : f32 to vector<16x128xf32>
    %228 = arith.mulf %0, %227 : vector<16x128xf32>
    %c14_44 = arith.constant 14 : index
    %229 = memref.load %arg2[%c14_44] : memref<32xf32, #tpu.memory_space<smem>>
    %230 = vector.broadcast %229 : f32 to vector<16x128xf32>
    %231 = arith.addf %228, %230 : vector<16x128xf32>
    %232 = arith.negf %231 : vector<16x128xf32>
    %233 = math.exp %232 : vector<16x128xf32>
    %cst_45 = arith.constant 1.000000e+00 : f32
    %234 = vector.broadcast %cst_45 : f32 to vector<16x128xf32>
    %235 = arith.addf %234, %233 : vector<16x128xf32>
    %236 = arith.divf %234, %235 : vector<16x128xf32>
    %237 = arith.mulf %231, %236 : vector<16x128xf32>
    %c14_46 = arith.constant 14 : index
    %238 = memref.load %arg3[%c14_46] : memref<32xf32, #tpu.memory_space<smem>>
    %239 = vector.broadcast %238 : f32 to vector<16x128xf32>
    %240 = arith.mulf %237, %239 : vector<16x128xf32>
    %241 = arith.addf %225, %240 : vector<16x128xf32>
    %c15 = arith.constant 15 : index
    %242 = memref.load %arg1[%c15] : memref<32xf32, #tpu.memory_space<smem>>
    %243 = vector.broadcast %242 : f32 to vector<16x128xf32>
    %244 = arith.mulf %0, %243 : vector<16x128xf32>
    %c15_47 = arith.constant 15 : index
    %245 = memref.load %arg2[%c15_47] : memref<32xf32, #tpu.memory_space<smem>>
    %246 = vector.broadcast %245 : f32 to vector<16x128xf32>
    %247 = arith.addf %244, %246 : vector<16x128xf32>
    %248 = arith.negf %247 : vector<16x128xf32>
    %249 = math.exp %248 : vector<16x128xf32>
    %cst_48 = arith.constant 1.000000e+00 : f32
    %250 = vector.broadcast %cst_48 : f32 to vector<16x128xf32>
    %251 = arith.addf %250, %249 : vector<16x128xf32>
    %252 = arith.divf %250, %251 : vector<16x128xf32>
    %253 = arith.mulf %247, %252 : vector<16x128xf32>
    %c15_49 = arith.constant 15 : index
    %254 = memref.load %arg3[%c15_49] : memref<32xf32, #tpu.memory_space<smem>>
    %255 = vector.broadcast %254 : f32 to vector<16x128xf32>
    %256 = arith.mulf %253, %255 : vector<16x128xf32>
    %257 = arith.addf %241, %256 : vector<16x128xf32>
    %c16 = arith.constant 16 : index
    %258 = memref.load %arg1[%c16] : memref<32xf32, #tpu.memory_space<smem>>
    %259 = vector.broadcast %258 : f32 to vector<16x128xf32>
    %260 = arith.mulf %0, %259 : vector<16x128xf32>
    %c16_50 = arith.constant 16 : index
    %261 = memref.load %arg2[%c16_50] : memref<32xf32, #tpu.memory_space<smem>>
    %262 = vector.broadcast %261 : f32 to vector<16x128xf32>
    %263 = arith.addf %260, %262 : vector<16x128xf32>
    %264 = arith.negf %263 : vector<16x128xf32>
    %265 = math.exp %264 : vector<16x128xf32>
    %cst_51 = arith.constant 1.000000e+00 : f32
    %266 = vector.broadcast %cst_51 : f32 to vector<16x128xf32>
    %267 = arith.addf %266, %265 : vector<16x128xf32>
    %268 = arith.divf %266, %267 : vector<16x128xf32>
    %269 = arith.mulf %263, %268 : vector<16x128xf32>
    %c16_52 = arith.constant 16 : index
    %270 = memref.load %arg3[%c16_52] : memref<32xf32, #tpu.memory_space<smem>>
    %271 = vector.broadcast %270 : f32 to vector<16x128xf32>
    %272 = arith.mulf %269, %271 : vector<16x128xf32>
    %273 = arith.addf %257, %272 : vector<16x128xf32>
    %c17 = arith.constant 17 : index
    %274 = memref.load %arg1[%c17] : memref<32xf32, #tpu.memory_space<smem>>
    %275 = vector.broadcast %274 : f32 to vector<16x128xf32>
    %276 = arith.mulf %0, %275 : vector<16x128xf32>
    %c17_53 = arith.constant 17 : index
    %277 = memref.load %arg2[%c17_53] : memref<32xf32, #tpu.memory_space<smem>>
    %278 = vector.broadcast %277 : f32 to vector<16x128xf32>
    %279 = arith.addf %276, %278 : vector<16x128xf32>
    %280 = arith.negf %279 : vector<16x128xf32>
    %281 = math.exp %280 : vector<16x128xf32>
    %cst_54 = arith.constant 1.000000e+00 : f32
    %282 = vector.broadcast %cst_54 : f32 to vector<16x128xf32>
    %283 = arith.addf %282, %281 : vector<16x128xf32>
    %284 = arith.divf %282, %283 : vector<16x128xf32>
    %285 = arith.mulf %279, %284 : vector<16x128xf32>
    %c17_55 = arith.constant 17 : index
    %286 = memref.load %arg3[%c17_55] : memref<32xf32, #tpu.memory_space<smem>>
    %287 = vector.broadcast %286 : f32 to vector<16x128xf32>
    %288 = arith.mulf %285, %287 : vector<16x128xf32>
    %289 = arith.addf %273, %288 : vector<16x128xf32>
    %c18 = arith.constant 18 : index
    %290 = memref.load %arg1[%c18] : memref<32xf32, #tpu.memory_space<smem>>
    %291 = vector.broadcast %290 : f32 to vector<16x128xf32>
    %292 = arith.mulf %0, %291 : vector<16x128xf32>
    %c18_56 = arith.constant 18 : index
    %293 = memref.load %arg2[%c18_56] : memref<32xf32, #tpu.memory_space<smem>>
    %294 = vector.broadcast %293 : f32 to vector<16x128xf32>
    %295 = arith.addf %292, %294 : vector<16x128xf32>
    %296 = arith.negf %295 : vector<16x128xf32>
    %297 = math.exp %296 : vector<16x128xf32>
    %cst_57 = arith.constant 1.000000e+00 : f32
    %298 = vector.broadcast %cst_57 : f32 to vector<16x128xf32>
    %299 = arith.addf %298, %297 : vector<16x128xf32>
    %300 = arith.divf %298, %299 : vector<16x128xf32>
    %301 = arith.mulf %295, %300 : vector<16x128xf32>
    %c18_58 = arith.constant 18 : index
    %302 = memref.load %arg3[%c18_58] : memref<32xf32, #tpu.memory_space<smem>>
    %303 = vector.broadcast %302 : f32 to vector<16x128xf32>
    %304 = arith.mulf %301, %303 : vector<16x128xf32>
    %305 = arith.addf %289, %304 : vector<16x128xf32>
    %c19 = arith.constant 19 : index
    %306 = memref.load %arg1[%c19] : memref<32xf32, #tpu.memory_space<smem>>
    %307 = vector.broadcast %306 : f32 to vector<16x128xf32>
    %308 = arith.mulf %0, %307 : vector<16x128xf32>
    %c19_59 = arith.constant 19 : index
    %309 = memref.load %arg2[%c19_59] : memref<32xf32, #tpu.memory_space<smem>>
    %310 = vector.broadcast %309 : f32 to vector<16x128xf32>
    %311 = arith.addf %308, %310 : vector<16x128xf32>
    %312 = arith.negf %311 : vector<16x128xf32>
    %313 = math.exp %312 : vector<16x128xf32>
    %cst_60 = arith.constant 1.000000e+00 : f32
    %314 = vector.broadcast %cst_60 : f32 to vector<16x128xf32>
    %315 = arith.addf %314, %313 : vector<16x128xf32>
    %316 = arith.divf %314, %315 : vector<16x128xf32>
    %317 = arith.mulf %311, %316 : vector<16x128xf32>
    %c19_61 = arith.constant 19 : index
    %318 = memref.load %arg3[%c19_61] : memref<32xf32, #tpu.memory_space<smem>>
    %319 = vector.broadcast %318 : f32 to vector<16x128xf32>
    %320 = arith.mulf %317, %319 : vector<16x128xf32>
    %321 = arith.addf %305, %320 : vector<16x128xf32>
    %c20 = arith.constant 20 : index
    %322 = memref.load %arg1[%c20] : memref<32xf32, #tpu.memory_space<smem>>
    %323 = vector.broadcast %322 : f32 to vector<16x128xf32>
    %324 = arith.mulf %0, %323 : vector<16x128xf32>
    %c20_62 = arith.constant 20 : index
    %325 = memref.load %arg2[%c20_62] : memref<32xf32, #tpu.memory_space<smem>>
    %326 = vector.broadcast %325 : f32 to vector<16x128xf32>
    %327 = arith.addf %324, %326 : vector<16x128xf32>
    %328 = arith.negf %327 : vector<16x128xf32>
    %329 = math.exp %328 : vector<16x128xf32>
    %cst_63 = arith.constant 1.000000e+00 : f32
    %330 = vector.broadcast %cst_63 : f32 to vector<16x128xf32>
    %331 = arith.addf %330, %329 : vector<16x128xf32>
    %332 = arith.divf %330, %331 : vector<16x128xf32>
    %333 = arith.mulf %327, %332 : vector<16x128xf32>
    %c20_64 = arith.constant 20 : index
    %334 = memref.load %arg3[%c20_64] : memref<32xf32, #tpu.memory_space<smem>>
    %335 = vector.broadcast %334 : f32 to vector<16x128xf32>
    %336 = arith.mulf %333, %335 : vector<16x128xf32>
    %337 = arith.addf %321, %336 : vector<16x128xf32>
    %c21 = arith.constant 21 : index
    %338 = memref.load %arg1[%c21] : memref<32xf32, #tpu.memory_space<smem>>
    %339 = vector.broadcast %338 : f32 to vector<16x128xf32>
    %340 = arith.mulf %0, %339 : vector<16x128xf32>
    %c21_65 = arith.constant 21 : index
    %341 = memref.load %arg2[%c21_65] : memref<32xf32, #tpu.memory_space<smem>>
    %342 = vector.broadcast %341 : f32 to vector<16x128xf32>
    %343 = arith.addf %340, %342 : vector<16x128xf32>
    %344 = arith.negf %343 : vector<16x128xf32>
    %345 = math.exp %344 : vector<16x128xf32>
    %cst_66 = arith.constant 1.000000e+00 : f32
    %346 = vector.broadcast %cst_66 : f32 to vector<16x128xf32>
    %347 = arith.addf %346, %345 : vector<16x128xf32>
    %348 = arith.divf %346, %347 : vector<16x128xf32>
    %349 = arith.mulf %343, %348 : vector<16x128xf32>
    %c21_67 = arith.constant 21 : index
    %350 = memref.load %arg3[%c21_67] : memref<32xf32, #tpu.memory_space<smem>>
    %351 = vector.broadcast %350 : f32 to vector<16x128xf32>
    %352 = arith.mulf %349, %351 : vector<16x128xf32>
    %353 = arith.addf %337, %352 : vector<16x128xf32>
    %c22 = arith.constant 22 : index
    %354 = memref.load %arg1[%c22] : memref<32xf32, #tpu.memory_space<smem>>
    %355 = vector.broadcast %354 : f32 to vector<16x128xf32>
    %356 = arith.mulf %0, %355 : vector<16x128xf32>
    %c22_68 = arith.constant 22 : index
    %357 = memref.load %arg2[%c22_68] : memref<32xf32, #tpu.memory_space<smem>>
    %358 = vector.broadcast %357 : f32 to vector<16x128xf32>
    %359 = arith.addf %356, %358 : vector<16x128xf32>
    %360 = arith.negf %359 : vector<16x128xf32>
    %361 = math.exp %360 : vector<16x128xf32>
    %cst_69 = arith.constant 1.000000e+00 : f32
    %362 = vector.broadcast %cst_69 : f32 to vector<16x128xf32>
    %363 = arith.addf %362, %361 : vector<16x128xf32>
    %364 = arith.divf %362, %363 : vector<16x128xf32>
    %365 = arith.mulf %359, %364 : vector<16x128xf32>
    %c22_70 = arith.constant 22 : index
    %366 = memref.load %arg3[%c22_70] : memref<32xf32, #tpu.memory_space<smem>>
    %367 = vector.broadcast %366 : f32 to vector<16x128xf32>
    %368 = arith.mulf %365, %367 : vector<16x128xf32>
    %369 = arith.addf %353, %368 : vector<16x128xf32>
    %c23 = arith.constant 23 : index
    %370 = memref.load %arg1[%c23] : memref<32xf32, #tpu.memory_space<smem>>
    %371 = vector.broadcast %370 : f32 to vector<16x128xf32>
    %372 = arith.mulf %0, %371 : vector<16x128xf32>
    %c23_71 = arith.constant 23 : index
    %373 = memref.load %arg2[%c23_71] : memref<32xf32, #tpu.memory_space<smem>>
    %374 = vector.broadcast %373 : f32 to vector<16x128xf32>
    %375 = arith.addf %372, %374 : vector<16x128xf32>
    %376 = arith.negf %375 : vector<16x128xf32>
    %377 = math.exp %376 : vector<16x128xf32>
    %cst_72 = arith.constant 1.000000e+00 : f32
    %378 = vector.broadcast %cst_72 : f32 to vector<16x128xf32>
    %379 = arith.addf %378, %377 : vector<16x128xf32>
    %380 = arith.divf %378, %379 : vector<16x128xf32>
    %381 = arith.mulf %375, %380 : vector<16x128xf32>
    %c23_73 = arith.constant 23 : index
    %382 = memref.load %arg3[%c23_73] : memref<32xf32, #tpu.memory_space<smem>>
    %383 = vector.broadcast %382 : f32 to vector<16x128xf32>
    %384 = arith.mulf %381, %383 : vector<16x128xf32>
    %385 = arith.addf %369, %384 : vector<16x128xf32>
    %c24 = arith.constant 24 : index
    %386 = memref.load %arg1[%c24] : memref<32xf32, #tpu.memory_space<smem>>
    %387 = vector.broadcast %386 : f32 to vector<16x128xf32>
    %388 = arith.mulf %0, %387 : vector<16x128xf32>
    %c24_74 = arith.constant 24 : index
    %389 = memref.load %arg2[%c24_74] : memref<32xf32, #tpu.memory_space<smem>>
    %390 = vector.broadcast %389 : f32 to vector<16x128xf32>
    %391 = arith.addf %388, %390 : vector<16x128xf32>
    %392 = arith.negf %391 : vector<16x128xf32>
    %393 = math.exp %392 : vector<16x128xf32>
    %cst_75 = arith.constant 1.000000e+00 : f32
    %394 = vector.broadcast %cst_75 : f32 to vector<16x128xf32>
    %395 = arith.addf %394, %393 : vector<16x128xf32>
    %396 = arith.divf %394, %395 : vector<16x128xf32>
    %397 = arith.mulf %391, %396 : vector<16x128xf32>
    %c24_76 = arith.constant 24 : index
    %398 = memref.load %arg3[%c24_76] : memref<32xf32, #tpu.memory_space<smem>>
    %399 = vector.broadcast %398 : f32 to vector<16x128xf32>
    %400 = arith.mulf %397, %399 : vector<16x128xf32>
    %401 = arith.addf %385, %400 : vector<16x128xf32>
    %c25 = arith.constant 25 : index
    %402 = memref.load %arg1[%c25] : memref<32xf32, #tpu.memory_space<smem>>
    %403 = vector.broadcast %402 : f32 to vector<16x128xf32>
    %404 = arith.mulf %0, %403 : vector<16x128xf32>
    %c25_77 = arith.constant 25 : index
    %405 = memref.load %arg2[%c25_77] : memref<32xf32, #tpu.memory_space<smem>>
    %406 = vector.broadcast %405 : f32 to vector<16x128xf32>
    %407 = arith.addf %404, %406 : vector<16x128xf32>
    %408 = arith.negf %407 : vector<16x128xf32>
    %409 = math.exp %408 : vector<16x128xf32>
    %cst_78 = arith.constant 1.000000e+00 : f32
    %410 = vector.broadcast %cst_78 : f32 to vector<16x128xf32>
    %411 = arith.addf %410, %409 : vector<16x128xf32>
    %412 = arith.divf %410, %411 : vector<16x128xf32>
    %413 = arith.mulf %407, %412 : vector<16x128xf32>
    %c25_79 = arith.constant 25 : index
    %414 = memref.load %arg3[%c25_79] : memref<32xf32, #tpu.memory_space<smem>>
    %415 = vector.broadcast %414 : f32 to vector<16x128xf32>
    %416 = arith.mulf %413, %415 : vector<16x128xf32>
    %417 = arith.addf %401, %416 : vector<16x128xf32>
    %c26 = arith.constant 26 : index
    %418 = memref.load %arg1[%c26] : memref<32xf32, #tpu.memory_space<smem>>
    %419 = vector.broadcast %418 : f32 to vector<16x128xf32>
    %420 = arith.mulf %0, %419 : vector<16x128xf32>
    %c26_80 = arith.constant 26 : index
    %421 = memref.load %arg2[%c26_80] : memref<32xf32, #tpu.memory_space<smem>>
    %422 = vector.broadcast %421 : f32 to vector<16x128xf32>
    %423 = arith.addf %420, %422 : vector<16x128xf32>
    %424 = arith.negf %423 : vector<16x128xf32>
    %425 = math.exp %424 : vector<16x128xf32>
    %cst_81 = arith.constant 1.000000e+00 : f32
    %426 = vector.broadcast %cst_81 : f32 to vector<16x128xf32>
    %427 = arith.addf %426, %425 : vector<16x128xf32>
    %428 = arith.divf %426, %427 : vector<16x128xf32>
    %429 = arith.mulf %423, %428 : vector<16x128xf32>
    %c26_82 = arith.constant 26 : index
    %430 = memref.load %arg3[%c26_82] : memref<32xf32, #tpu.memory_space<smem>>
    %431 = vector.broadcast %430 : f32 to vector<16x128xf32>
    %432 = arith.mulf %429, %431 : vector<16x128xf32>
    %433 = arith.addf %417, %432 : vector<16x128xf32>
    %c27 = arith.constant 27 : index
    %434 = memref.load %arg1[%c27] : memref<32xf32, #tpu.memory_space<smem>>
    %435 = vector.broadcast %434 : f32 to vector<16x128xf32>
    %436 = arith.mulf %0, %435 : vector<16x128xf32>
    %c27_83 = arith.constant 27 : index
    %437 = memref.load %arg2[%c27_83] : memref<32xf32, #tpu.memory_space<smem>>
    %438 = vector.broadcast %437 : f32 to vector<16x128xf32>
    %439 = arith.addf %436, %438 : vector<16x128xf32>
    %440 = arith.negf %439 : vector<16x128xf32>
    %441 = math.exp %440 : vector<16x128xf32>
    %cst_84 = arith.constant 1.000000e+00 : f32
    %442 = vector.broadcast %cst_84 : f32 to vector<16x128xf32>
    %443 = arith.addf %442, %441 : vector<16x128xf32>
    %444 = arith.divf %442, %443 : vector<16x128xf32>
    %445 = arith.mulf %439, %444 : vector<16x128xf32>
    %c27_85 = arith.constant 27 : index
    %446 = memref.load %arg3[%c27_85] : memref<32xf32, #tpu.memory_space<smem>>
    %447 = vector.broadcast %446 : f32 to vector<16x128xf32>
    %448 = arith.mulf %445, %447 : vector<16x128xf32>
    %449 = arith.addf %433, %448 : vector<16x128xf32>
    %c28 = arith.constant 28 : index
    %450 = memref.load %arg1[%c28] : memref<32xf32, #tpu.memory_space<smem>>
    %451 = vector.broadcast %450 : f32 to vector<16x128xf32>
    %452 = arith.mulf %0, %451 : vector<16x128xf32>
    %c28_86 = arith.constant 28 : index
    %453 = memref.load %arg2[%c28_86] : memref<32xf32, #tpu.memory_space<smem>>
    %454 = vector.broadcast %453 : f32 to vector<16x128xf32>
    %455 = arith.addf %452, %454 : vector<16x128xf32>
    %456 = arith.negf %455 : vector<16x128xf32>
    %457 = math.exp %456 : vector<16x128xf32>
    %cst_87 = arith.constant 1.000000e+00 : f32
    %458 = vector.broadcast %cst_87 : f32 to vector<16x128xf32>
    %459 = arith.addf %458, %457 : vector<16x128xf32>
    %460 = arith.divf %458, %459 : vector<16x128xf32>
    %461 = arith.mulf %455, %460 : vector<16x128xf32>
    %c28_88 = arith.constant 28 : index
    %462 = memref.load %arg3[%c28_88] : memref<32xf32, #tpu.memory_space<smem>>
    %463 = vector.broadcast %462 : f32 to vector<16x128xf32>
    %464 = arith.mulf %461, %463 : vector<16x128xf32>
    %465 = arith.addf %449, %464 : vector<16x128xf32>
    %c29 = arith.constant 29 : index
    %466 = memref.load %arg1[%c29] : memref<32xf32, #tpu.memory_space<smem>>
    %467 = vector.broadcast %466 : f32 to vector<16x128xf32>
    %468 = arith.mulf %0, %467 : vector<16x128xf32>
    %c29_89 = arith.constant 29 : index
    %469 = memref.load %arg2[%c29_89] : memref<32xf32, #tpu.memory_space<smem>>
    %470 = vector.broadcast %469 : f32 to vector<16x128xf32>
    %471 = arith.addf %468, %470 : vector<16x128xf32>
    %472 = arith.negf %471 : vector<16x128xf32>
    %473 = math.exp %472 : vector<16x128xf32>
    %cst_90 = arith.constant 1.000000e+00 : f32
    %474 = vector.broadcast %cst_90 : f32 to vector<16x128xf32>
    %475 = arith.addf %474, %473 : vector<16x128xf32>
    %476 = arith.divf %474, %475 : vector<16x128xf32>
    %477 = arith.mulf %471, %476 : vector<16x128xf32>
    %c29_91 = arith.constant 29 : index
    %478 = memref.load %arg3[%c29_91] : memref<32xf32, #tpu.memory_space<smem>>
    %479 = vector.broadcast %478 : f32 to vector<16x128xf32>
    %480 = arith.mulf %477, %479 : vector<16x128xf32>
    %481 = arith.addf %465, %480 : vector<16x128xf32>
    %c30 = arith.constant 30 : index
    %482 = memref.load %arg1[%c30] : memref<32xf32, #tpu.memory_space<smem>>
    %483 = vector.broadcast %482 : f32 to vector<16x128xf32>
    %484 = arith.mulf %0, %483 : vector<16x128xf32>
    %c30_92 = arith.constant 30 : index
    %485 = memref.load %arg2[%c30_92] : memref<32xf32, #tpu.memory_space<smem>>
    %486 = vector.broadcast %485 : f32 to vector<16x128xf32>
    %487 = arith.addf %484, %486 : vector<16x128xf32>
    %488 = arith.negf %487 : vector<16x128xf32>
    %489 = math.exp %488 : vector<16x128xf32>
    %cst_93 = arith.constant 1.000000e+00 : f32
    %490 = vector.broadcast %cst_93 : f32 to vector<16x128xf32>
    %491 = arith.addf %490, %489 : vector<16x128xf32>
    %492 = arith.divf %490, %491 : vector<16x128xf32>
    %493 = arith.mulf %487, %492 : vector<16x128xf32>
    %c30_94 = arith.constant 30 : index
    %494 = memref.load %arg3[%c30_94] : memref<32xf32, #tpu.memory_space<smem>>
    %495 = vector.broadcast %494 : f32 to vector<16x128xf32>
    %496 = arith.mulf %493, %495 : vector<16x128xf32>
    %497 = arith.addf %481, %496 : vector<16x128xf32>
    %c31 = arith.constant 31 : index
    %498 = memref.load %arg1[%c31] : memref<32xf32, #tpu.memory_space<smem>>
    %499 = vector.broadcast %498 : f32 to vector<16x128xf32>
    %500 = arith.mulf %0, %499 : vector<16x128xf32>
    %c31_95 = arith.constant 31 : index
    %501 = memref.load %arg2[%c31_95] : memref<32xf32, #tpu.memory_space<smem>>
    %502 = vector.broadcast %501 : f32 to vector<16x128xf32>
    %503 = arith.addf %500, %502 : vector<16x128xf32>
    %504 = arith.negf %503 : vector<16x128xf32>
    %505 = math.exp %504 : vector<16x128xf32>
    %cst_96 = arith.constant 1.000000e+00 : f32
    %506 = vector.broadcast %cst_96 : f32 to vector<16x128xf32>
    %507 = arith.addf %506, %505 : vector<16x128xf32>
    %508 = arith.divf %506, %507 : vector<16x128xf32>
    %509 = arith.mulf %503, %508 : vector<16x128xf32>
    %c31_97 = arith.constant 31 : index
    %510 = memref.load %arg3[%c31_97] : memref<32xf32, #tpu.memory_space<smem>>
    %511 = vector.broadcast %510 : f32 to vector<16x128xf32>
    %512 = arith.mulf %509, %511 : vector<16x128xf32>
    %513 = arith.addf %497, %512 : vector<16x128xf32>
    %c0_98 = arith.constant 0 : index
    %514 = memref.load %arg4[%c0_98] : memref<1xf32, #tpu.memory_space<smem>>
    %515 = vector.broadcast %514 : f32 to vector<16x128xf32>
    %516 = arith.addf %513, %515 : vector<16x128xf32>
    %c0_99 = arith.constant 0 : index
    %c0_100 = arith.constant 0 : index
    %517 = vector.load %arg6[%c0_99, %c0_100] : memref<16x128xf32, #tpu.memory_space<vmem>>, vector<16x128xf32>
    tpu.vector_store %arg6[%c0_99, %c0_100], %516 {strides = array<i32>} : memref<16x128xf32, #tpu.memory_space<vmem>>, vector<16x128xf32>,
    return
  }
  func.func @transform_0(%arg0: i32) -> i32 {
    %c0_i32 = arith.constant 0 : i32
    %c0_i32_0 = arith.constant 0 : i32
    return %c0_i32 : i32
  }
  func.func @transform_1(%arg0: i32) -> i32 {
    %c0_i32 = arith.constant 0 : i32
    %c0_i32_0 = arith.constant 0 : i32
    return %c0_i32 : i32
  }
  func.func @transform_2(%arg0: i32) -> i32 {
    %c0_i32 = arith.constant 0 : i32
    %c0_i32_0 = arith.constant 0 : i32
    return %c0_i32 : i32
  }
  func.func @transform_3(%arg0: i32) -> i32 {
    %c0_i32 = arith.constant 0 : i32
    %c0_i32_0 = arith.constant 0 : i32
    return %c0_i32 : i32
  }
  func.func @transform_4(%arg0: i32) -> (i32, i32) {
    %c0_i32 = arith.constant 0 : i32
    %c0_i32_0 = arith.constant 0 : i32
    return %arg0, %c0_i32 : i32, i32
  }
  func.func @transform_5(%arg0: i32) -> (i32, i32) {
    %c0_i32 = arith.constant 0 : i32
    %c0_i32_0 = arith.constant 0 : i32
    return %arg0, %c0_i32 : i32, i32
  }
}

</mosaic_0001>

<llo_original>
// kernel: tpu_custom_call.1
$region0: #{tpu_custom_call.1}
  #allocation0 [shape = 'u32[]', space=smem, size = 0x4, offset = 0x4, fixed_abs, tag = 'smem constant byte address 0x4 - core index']
  #allocation1 [shape = 'u32[72,128]{1,0:T(1,128)}', space=vmem, size = 0x9000, scoped, tag = 'internal scratch']
  #allocation2 [shape = 'f32[1]{0:T(128)S(6)}', space=smem, size = 0x200, scoped, tag = 'scoped memory for tpu_custom_call.1']
  %s0 = inlined_call_operand.vmem [shape: f32[32], index: 0, kind: input, shape index: {}]
  %s1 = inlined_call_operand.vmem [shape: f32[32], index: 1, kind: input, shape index: {}]
  %s2 = inlined_call_operand.vmem [shape: f32[32], index: 2, kind: input, shape index: {}]
  %s3 = inlined_call_operand.<no memory space> [shape: f32[1], index: 3, kind: input, shape index: {}]
  %s4 = inlined_call_operand.hbm [shape: f32[16,128], index: 4, kind: input, shape index: {}]
  %s5 = inlined_call_operand.hbm [shape: f32[16,128], index: 5, kind: output, shape index: {}]
  %s6 = sld [smem:[#allocation0]]
  $region46: #{tpu_custom_call.1} parent=0
    _
  %s8 = ssub.s32 1, %s6
  %s9 = scalar_select 0, %s8, %s6
  %10 = sst [smem:[#allocation2]] %s3
  $region1: #{tpu_custom_call.1} parent=0
    #allocation3 [shape = 'u8[512]{0}', space=smem, size = 0x200, scoped, tag = 'input window, operand 0, single buffered']
    #allocation4 [shape = 's32[1]{0}', space=sflag, size = 0x4, scoped, tag = 'scoped memory for tpu_custom_call.1']
    #allocation5 [shape = 's32[1]{0}', space=sflag, size = 0x4, scoped, tag = 'scoped memory for tpu_custom_call.1']
    #allocation6 [shape = 's32[1]{0}', space=sflag, size = 0x4, scoped, tag = 'scoped memory for tpu_custom_call.1']
    #allocation7 [shape = 'u8[512]{0}', space=smem, size = 0x200, scoped, tag = 'input window, operand 1, single buffered']
    #allocation8 [shape = 's32[1]{0}', space=sflag, size = 0x4, scoped, tag = 'scoped memory for tpu_custom_call.1']
    #allocation9 [shape = 'u8[512]{0}', space=smem, size = 0x200, scoped, tag = 'input window, operand 2, single buffered']
    #allocation10 [shape = 'u8[8192]{0}', space=vmem, size = 0x2000, scoped, tag = 'input window, operand 4, single buffered']
    #allocation11 [shape = 'u8[8192]{0}', space=vmem, size = 0x2000, scoped, tag = 'output window, operand 0, single buffered']
    %11 = vsyncpa [#allocation6], 0
    %12 = vsyncpa [#allocation8], 0
    %13 = vsyncpa [#allocation4], 0
    %14 = vsyncpa [#allocation5], 0
    // Predicated region
    $region2: #{tpu_custom_call.1} parent=1 // pred_check
      _
    $region3: #{tpu_custom_call.1} parent=1 // pred_check_branch
      %16 = sbr.rel (0) target = $region5
    $region4: #{tpu_custom_call.1} parent=1 // pred_region
      %18 = vsyncadd [#allocation6], 0
      %s20 = sshll.u32 %s0, 4
      %s21 = int_to_ptr.vmem [resolvable:$true] %s20
      %23 = dma.vmem_to_smem %s21, 16, [#allocation3], [#allocation6]
    $region5: #{tpu_custom_call.1} parent=1 // pred_fallthru
      _
    // Predicated region
    $region6: #{tpu_custom_call.1} parent=1 // pred_check
      _
    $region7: #{tpu_custom_call.1} parent=1 // pred_check_branch
      %25 = sbr.rel (0) target = $region9
    $region8: #{tpu_custom_call.1} parent=1 // pred_region
      %27 = vsyncadd [#allocation8], 0
      %s29 = sshll.u32 %s1, 4
      %s30 = int_to_ptr.vmem [resolvable:$true] %s29
      %32 = dma.vmem_to_smem %s30, 16, [#allocation7], [#allocation8]
    $region9: #{tpu_custom_call.1} parent=1 // pred_fallthru
      _
    // Predicated region
    $region10: #{tpu_custom_call.1} parent=1 // pred_check
      _
    $region11: #{tpu_custom_call.1} parent=1 // pred_check_branch
      %34 = sbr.rel (0) target = $region13
    $region12: #{tpu_custom_call.1} parent=1 // pred_region
      %36 = vsyncadd [#allocation8], 0
      %s38 = sshll.u32 %s2, 4
      %s39 = int_to_ptr.vmem [resolvable:$true] %s38
      %41 = dma.vmem_to_smem %s39, 16, [#allocation9], [#allocation8]
    $region13: #{tpu_custom_call.1} parent=1 // pred_fallthru
      _
    // Predicated region
    $region14: #{tpu_custom_call.1} parent=1 // pred_check
      _
    $region15: #{tpu_custom_call.1} parent=1 // pred_check_branch
      %43 = sbr.rel (0) target = $region17
    $region16: #{tpu_custom_call.1} parent=1 // pred_region
      _
    $region17: #{tpu_custom_call.1} parent=1 // pred_fallthru
      _
    // Predicated region
    $region18: #{tpu_custom_call.1} parent=1 // pred_check
      _
    $region19: #{tpu_custom_call.1} parent=1 // pred_check_branch
      %45 = sbr.rel (0) target = $region21
    $region20: #{tpu_custom_call.1} parent=1 // pred_region
      %47 = vsyncadd [#allocation4], 0
      %s48 = sshll.u32 %s4, 4
      %s49 = int_to_ptr.hbm [resolvable:$true] %s48
      %s50 = sshll.u32 [#allocation10], 4
      %s51 = int_to_ptr.vmem [resolvable:$true] %s50
      %56 = dma.hbm_to_vmem [thread:$0]  %s49, 256, %s51, [#allocation4], 128, 128, 8
    $region21: #{tpu_custom_call.1} parent=1 // pred_fallthru
      _
    // Predicated region
    $region22: #{tpu_custom_call.1} parent=1 // pred_check
      _
    $region23: #{tpu_custom_call.1} parent=1 // pred_check_branch
      %58 = sbr.rel (0) target = $region25
    $region24: #{tpu_custom_call.1} parent=1 // pred_region
      %60 = dma.done [#allocation6], 16
    $region25: #{tpu_custom_call.1} parent=1 // pred_fallthru
      _
    // Predicated region
    $region26: #{tpu_custom_call.1} parent=1 // pred_check
      _
    $region27: #{tpu_custom_call.1} parent=1 // pred_check_branch
      %62 = sbr.rel (0) target = $region29
    $region28: #{tpu_custom_call.1} parent=1 // pred_region
      %64 = dma.done [#allocation8], 16
    $region29: #{tpu_custom_call.1} parent=1 // pred_fallthru
      _
    // Predicated region
    $region30: #{tpu_custom_call.1} parent=1 // pred_check
      _
    $region31: #{tpu_custom_call.1} parent=1 // pred_check_branch
      %66 = sbr.rel (0) target = $region33
    $region32: #{tpu_custom_call.1} parent=1 // pred_region
      %68 = dma.done [#allocation8], 16
    $region33: #{tpu_custom_call.1} parent=1 // pred_fallthru
      _
    // Predicated region
    $region34: #{tpu_custom_call.1} parent=1 // pred_check
      _
    $region35: #{tpu_custom_call.1} parent=1 // pred_check_branch
      %70 = sbr.rel (0) target = $region37
    $region36: #{tpu_custom_call.1} parent=1 // pred_region
      %72 = dma.done [#allocation4], 256
    $region37: #{tpu_custom_call.1} parent=1 // pred_fallthru
      _
    %73 = sfence
    %v74 = vld [vmem:[#allocation10] sm:$0xff]
    %v75 = vld [vmem:[#allocation10 + $0x8] sm:$0xff]
    %s76 = sld [smem:[#allocation3]]
    %v77 = vstv %s76
    %v78 = vmul.f32 %v74, %v77
    %v79 = vmul.f32 %v75, %v77
    %s80 = sld [smem:[#allocation7]]
    %v81 = vstv %s80
    %v82 = vadd.f32 %v78, %v81
    %v83 = vadd.f32 %v79, %v81
    %v84 = vxor.u32 %v82, 2147483648
    %v85 = vxor.u32 %v83, 2147483648
    %v86 = vmul.f32 %v84, 1.442695
    %v87 = vpow.pop %v86
    %v88 = vmul.f32 %v85, 1.442695
    %v89 = vpow.pop %v88
    %v90 = vadd.f32 %v87, 1.0
    %v91 = vadd.f32 %v89, 1.0
    %v92 = vrcp.pop %v90
    %v93 = vmul.f32 %v90, %v92
    %v94 = vsub.f32 1.0, %v93
    %v95 = vmul.f32 %v92, %v94
    %v96 = vadd.f32 %v92, %v95
    %vm97 = vweird.f32 %v90
    %vm98 = vweird.f32 %v92
    %vm99 = vmor %vm97, %vm98
    %v100 = vsel %vm99, %v92, %v96
    %v101 = vand.u32 2147483647, %v90
    %vm102 = vcmp.eq.f32.partialorder %v101, 8.507059e+37
    %v103 = vand.u32 %v90, 2147483648
    %v104 = vor.u32 1.1754944e-38, %v103
    %v105 = vsel %vm102, %v104, %v100
    %v106 = vmul.f32 1.0, %v105
    %v107 = vrcp.pop %v91
    %v108 = vmul.f32 %v91, %v107
    %v109 = vsub.f32 1.0, %v108
    %v110 = vmul.f32 %v107, %v109
    %v111 = vadd.f32 %v107, %v110
    %vm112 = vweird.f32 %v91
    %vm113 = vweird.f32 %v107
    %vm114 = vmor %vm112, %vm113
    %v115 = vsel %vm114, %v107, %v111
    %v116 = vand.u32 2147483647, %v91
    %vm117 = vcmp.eq.f32.partialorder %v116, 8.507059e+37
    %v118 = vand.u32 %v91, 2147483648
    %v119 = vor.u32 1.1754944e-38, %v118
    %v120 = vsel %vm117, %v119, %v115
    %v121 = vmul.f32 1.0, %v120
    %v122 = vmul.f32 %v82, %v106
    %v123 = vmul.f32 %v83, %v121
    %s124 = sld [smem:[#allocation9]]
    %v125 = vstv %s124
    %v126 = vmul.f32 %v122, %v125
    %v127 = vmul.f32 %v123, %v125
    %v128 = vadd.f32 %v126, 0.0
    %v129 = vadd.f32 %v127, 0.0
    %s130 = sld [smem:[#allocation3 + $0x1]]
    %v131 = vstv %s130
    %v132 = vmul.f32 %v74, %v131
    %v133 = vmul.f32 %v75, %v131
    %s134 = sld [smem:[#allocation7 + $0x1]]
    %v135 = vstv %s134
    %v136 = vadd.f32 %v132, %v135
    %v137 = vadd.f32 %v133, %v135
    %v138 = vxor.u32 %v136, 2147483648
    %v139 = vxor.u32 %v137, 2147483648
    %v140 = vmul.f32 %v138, 1.442695
    %v141 = vpow.pop %v140
    %v142 = vmul.f32 %v139, 1.442695
    %v143 = vpow.pop %v142
    %v144 = vadd.f32 %v141, 1.0
    %v145 = vadd.f32 %v143, 1.0
    %v146 = vrcp.pop %v144
    %v147 = vmul.f32 %v144, %v146
    %v148 = vsub.f32 1.0, %v147
    %v149 = vmul.f32 %v146, %v148
    %v150 = vadd.f32 %v146, %v149
    %vm151 = vweird.f32 %v144
    %vm152 = vweird.f32 %v146
    %vm153 = vmor %vm151, %vm152
    %v154 = vsel %vm153, %v146, %v150
    %v155 = vand.u32 2147483647, %v144
    %vm156 = vcmp.eq.f32.partialorder %v155, 8.507059e+37
    %v157 = vand.u32 %v144, 2147483648
    %v158 = vor.u32 1.1754944e-38, %v157
    %v159 = vsel %vm156, %v158, %v154
    %v160 = vmul.f32 1.0, %v159
    %v161 = vrcp.pop %v145
    %v162 = vmul.f32 %v145, %v161
    %v163 = vsub.f32 1.0, %v162
    %v164 = vmul.f32 %v161, %v163
    %v165 = vadd.f32 %v161, %v164
    %vm166 = vweird.f32 %v145
    %vm167 = vweird.f32 %v161
    %vm168 = vmor %vm166, %vm167
    %v169 = vsel %vm168, %v161, %v165
    %v170 = vand.u32 2147483647, %v145
    %vm171 = vcmp.eq.f32.partialorder %v170, 8.507059e+37
    %v172 = vand.u32 %v145, 2147483648
    %v173 = vor.u32 1.1754944e-38, %v172
    %v174 = vsel %vm171, %v173, %v169
    %v175 = vmul.f32 1.0, %v174
    %v176 = vmul.f32 %v136, %v160
    %v177 = vmul.f32 %v137, %v175
    %s178 = sld [smem:[#allocation9 + $0x1]]
    %v179 = vstv %s178
    %v180 = vmul.f32 %v176, %v179
    %v181 = vmul.f32 %v177, %v179
    %v182 = vadd.f32 %v128, %v180
    %v183 = vadd.f32 %v129, %v181
    %s184 = sld [smem:[#allocation3 + $0x2]]
    %v185 = vstv %s184
    %v186 = vmul.f32 %v74, %v185
    %v187 = vmul.f32 %v75, %v185
    %s188 = sld [smem:[#allocation7 + $0x2]]
    %v189 = vstv %s188
    %v190 = vadd.f32 %v186, %v189
    %v191 = vadd.f32 %v187, %v189
    %v192 = vxor.u32 %v190, 2147483648
    %v193 = vxor.u32 %v191, 2147483648
    %v194 = vmul.f32 %v192, 1.442695
    %v195 = vpow.pop %v194
    %v196 = vmul.f32 %v193, 1.442695
    %v197 = vpow.pop %v196
    %v198 = vadd.f32 %v195, 1.0
    %v199 = vadd.f32 %v197, 1.0
    %v200 = vrcp.pop %v198
    %v201 = vmul.f32 %v198, %v200
    %v202 = vsub.f32 1.0, %v201
    %v203 = vmul.f32 %v200, %v202
    %v204 = vadd.f32 %v200, %v203
    %vm205 = vweird.f32 %v198
    %vm206 = vweird.f32 %v200
    %vm207 = vmor %vm205, %vm206
    %v208 = vsel %vm207, %v200, %v204
    %v209 = vand.u32 2147483647, %v198
    %vm210 = vcmp.eq.f32.partialorder %v209, 8.507059e+37
    %v211 = vand.u32 %v198, 2147483648
    %v212 = vor.u32 1.1754944e-38, %v211
    %v213 = vsel %vm210, %v212, %v208
    %v214 = vmul.f32 1.0, %v213
    %v215 = vrcp.pop %v199
    %v216 = vmul.f32 %v199, %v215
    %v217 = vsub.f32 1.0, %v216
    %v218 = vmul.f32 %v215, %v217
    %v219 = vadd.f32 %v215, %v218
    %vm220 = vweird.f32 %v199
    %vm221 = vweird.f32 %v215
    %vm222 = vmor %vm220, %vm221
    %v223 = vsel %vm222, %v215, %v219
    %v224 = vand.u32 2147483647, %v199
    %vm225 = vcmp.eq.f32.partialorder %v224, 8.507059e+37
    %v226 = vand.u32 %v199, 2147483648
    %v227 = vor.u32 1.1754944e-38, %v226
    %v228 = vsel %vm225, %v227, %v223
    %v229 = vmul.f32 1.0, %v228
    %v230 = vmul.f32 %v190, %v214
    %v231 = vmul.f32 %v191, %v229
    %s232 = sld [smem:[#allocation9 + $0x2]]
    %v233 = vstv %s232
    %v234 = vmul.f32 %v230, %v233
    %v235 = vmul.f32 %v231, %v233
    %v236 = vadd.f32 %v182, %v234
    %v237 = vadd.f32 %v183, %v235
    %s238 = sld [smem:[#allocation3 + $0x3]]
    %v239 = vstv %s238
    %v240 = vmul.f32 %v74, %v239
    %v241 = vmul.f32 %v75, %v239
    %s242 = sld [smem:[#allocation7 + $0x3]]
    %v243 = vstv %s242
    %v244 = vadd.f32 %v240, %v243
    %v245 = vadd.f32 %v241, %v243
    %v246 = vxor.u32 %v244, 2147483648
    %v247 = vxor.u32 %v245, 2147483648
    %v248 = vmul.f32 %v246, 1.442695
    %v249 = vpow.pop %v248
    %v250 = vmul.f32 %v247, 1.442695
    %v251 = vpow.pop %v250
    %v252 = vadd.f32 %v249, 1.0
    %v253 = vadd.f32 %v251, 1.0
    %v254 = vrcp.pop %v252
    %v255 = vmul.f32 %v252, %v254
    %v256 = vsub.f32 1.0, %v255
    %v257 = vmul.f32 %v254, %v256
    %v258 = vadd.f32 %v254, %v257
    %vm259 = vweird.f32 %v252
    %vm260 = vweird.f32 %v254
    %vm261 = vmor %vm259, %vm260
    %v262 = vsel %vm261, %v254, %v258
    %v263 = vand.u32 2147483647, %v252
    %vm264 = vcmp.eq.f32.partialorder %v263, 8.507059e+37
    %v265 = vand.u32 %v252, 2147483648
    %v266 = vor.u32 1.1754944e-38, %v265
    %v267 = vsel %vm264, %v266, %v262
    %v268 = vmul.f32 1.0, %v267
    %v269 = vrcp.pop %v253
    %v270 = vmul.f32 %v253, %v269
    %v271 = vsub.f32 1.0, %v270
    %v272 = vmul.f32 %v269, %v271
    %v273 = vadd.f32 %v269, %v272
    %vm274 = vweird.f32 %v253
    %vm275 = vweird.f32 %v269
    %vm276 = vmor %vm274, %vm275
    %v277 = vsel %vm276, %v269, %v273
    %v278 = vand.u32 2147483647, %v253
    %vm279 = vcmp.eq.f32.partialorder %v278, 8.507059e+37
    %v280 = vand.u32 %v253, 2147483648
    %v281 = vor.u32 1.1754944e-38, %v280
    %v282 = vsel %vm279, %v281, %v277
    %v283 = vmul.f32 1.0, %v282
    %v284 = vmul.f32 %v244, %v268
    %v285 = vmul.f32 %v245, %v283
    %s286 = sld [smem:[#allocation9 + $0x3]]
    %v287 = vstv %s286
    %v288 = vmul.f32 %v284, %v287
    %v289 = vmul.f32 %v285, %v287
    %v290 = vadd.f32 %v236, %v288
    %v291 = vadd.f32 %v237, %v289
    %s292 = sld [smem:[#allocation3 + $0x4]]
    %v293 = vstv %s292
    %v294 = vmul.f32 %v74, %v293
    %v295 = vmul.f32 %v75, %v293
    %s296 = sld [smem:[#allocation7 + $0x4]]
    %v297 = vstv %s296
    %v298 = vadd.f32 %v294, %v297
    %v299 = vadd.f32 %v295, %v297
    %v300 = vxor.u32 %v298, 2147483648
    %v301 = vxor.u32 %v299, 2147483648
    %v302 = vmul.f32 %v300, 1.442695
    %v303 = vpow.pop %v302
    %v304 = vmul.f32 %v301, 1.442695
    %v305 = vpow.pop %v304
    %v306 = vadd.f32 %v303, 1.0
    %v307 = vadd.f32 %v305, 1.0
    %v308 = vrcp.pop %v306
    %v309 = vmul.f32 %v306, %v308
    %v310 = vsub.f32 1.0, %v309
    %v311 = vmul.f32 %v308, %v310
    %v312 = vadd.f32 %v308, %v311
    %vm313 = vweird.f32 %v306
    %vm314 = vweird.f32 %v308
    %vm315 = vmor %vm313, %vm314
    %v316 = vsel %vm315, %v308, %v312
    %v317 = vand.u32 2147483647, %v306
    %vm318 = vcmp.eq.f32.partialorder %v317, 8.507059e+37
    %v319 = vand.u32 %v306, 2147483648
    %v320 = vor.u32 1.1754944e-38, %v319
    %v321 = vsel %vm318, %v320, %v316
    %v322 = vmul.f32 1.0, %v321
    %v323 = vrcp.pop %v307
    %v324 = vmul.f32 %v307, %v323
    %v325 = vsub.f32 1.0, %v324
    %v326 = vmul.f32 %v323, %v325
    %v327 = vadd.f32 %v323, %v326
    %vm328 = vweird.f32 %v307
    %vm329 = vweird.f32 %v323
    %vm330 = vmor %vm328, %vm329
    %v331 = vsel %vm330, %v323, %v327
    %v332 = vand.u32 2147483647, %v307
    %vm333 = vcmp.eq.f32.partialorder %v332, 8.507059e+37
    %v334 = vand.u32 %v307, 2147483648
    %v335 = vor.u32 1.1754944e-38, %v334
    %v336 = vsel %vm333, %v335, %v331
    %v337 = vmul.f32 1.0, %v336
    %v338 = vmul.f32 %v298, %v322
    %v339 = vmul.f32 %v299, %v337
    %s340 = sld [smem:[#allocation9 + $0x4]]
    %v341 = vstv %s340
    %v342 = vmul.f32 %v338, %v341
    %v343 = vmul.f32 %v339, %v341
    %v344 = vadd.f32 %v290, %v342
    %v345 = vadd.f32 %v291, %v343
    %s346 = sld [smem:[#allocation3 + $0x5]]
    %v347 = vstv %s346
    %v348 = vmul.f32 %v74, %v347
    %v349 = vmul.f32 %v75, %v347
    %s350 = sld [smem:[#allocation7 + $0x5]]
    %v351 = vstv %s350
    %v352 = vadd.f32 %v348, %v351
    %v353 = vadd.f32 %v349, %v351
    %v354 = vxor.u32 %v352, 2147483648
    %v355 = vxor.u32 %v353, 2147483648
    %v356 = vmul.f32 %v354, 1.442695
    %v357 = vpow.pop %v356
    %v358 = vmul.f32 %v355, 1.442695
    %v359 = vpow.pop %v358
    %v360 = vadd.f32 %v357, 1.0
    %v361 = vadd.f32 %v359, 1.0
    %v362 = vrcp.pop %v360
    %v363 = vmul.f32 %v360, %v362
    %v364 = vsub.f32 1.0, %v363
    %v365 = vmul.f32 %v362, %v364
    %v366 = vadd.f32 %v362, %v365
    %vm367 = vweird.f32 %v360
    %vm368 = vweird.f32 %v362
    %vm369 = vmor %vm367, %vm368
    %v370 = vsel %vm369, %v362, %v366
    %v371 = vand.u32 2147483647, %v360
    %vm372 = vcmp.eq.f32.partialorder %v371, 8.507059e+37
    %v373 = vand.u32 %v360, 2147483648
    %v374 = vor.u32 1.1754944e-38, %v373
    %v375 = vsel %vm372, %v374, %v370
    %v376 = vmul.f32 1.0, %v375
    %v377 = vrcp.pop %v361
    %v378 = vmul.f32 %v361, %v377
    %v379 = vsub.f32 1.0, %v378
    %v380 = vmul.f32 %v377, %v379
    %v381 = vadd.f32 %v377, %v380
    %vm382 = vweird.f32 %v361
    %vm383 = vweird.f32 %v377
    %vm384 = vmor %vm382, %vm383
    %v385 = vsel %vm384, %v377, %v381
    %v386 = vand.u32 2147483647, %v361
    %vm387 = vcmp.eq.f32.partialorder %v386, 8.507059e+37
    %v388 = vand.u32 %v361, 2147483648
    %v389 = vor.u32 1.1754944e-38, %v388
    %v390 = vsel %vm387, %v389, %v385
    %v391 = vmul.f32 1.0, %v390
    %v392 = vmul.f32 %v352, %v376
    %v393 = vmul.f32 %v353, %v391
    %s394 = sld [smem:[#allocation9 + $0x5]]
    %v395 = vstv %s394
    %v396 = vmul.f32 %v392, %v395
    %v397 = vmul.f32 %v393, %v395
    %v398 = vadd.f32 %v344, %v396
    %v399 = vadd.f32 %v345, %v397
    %s400 = sld [smem:[#allocation3 + $0x6]]
    %v401 = vstv %s400
    %v402 = vmul.f32 %v74, %v401
    %v403 = vmul.f32 %v75, %v401
    %s404 = sld [smem:[#allocation7 + $0x6]]
    %v405 = vstv %s404
    %v406 = vadd.f32 %v402, %v405
    %v407 = vadd.f32 %v403, %v405
    %v408 = vxor.u32 %v406, 2147483648
    %v409 = vxor.u32 %v407, 2147483648
    %v410 = vmul.f32 %v408, 1.442695
    %v411 = vpow.pop %v410
    %v412 = vmul.f32 %v409, 1.442695
    %v413 = vpow.pop %v412
    %v414 = vadd.f32 %v411, 1.0
    %v415 = vadd.f32 %v413, 1.0
    %v416 = vrcp.pop %v414
    %v417 = vmul.f32 %v414, %v416
    %v418 = vsub.f32 1.0, %v417
    %v419 = vmul.f32 %v416, %v418
    %v420 = vadd.f32 %v416, %v419
    %vm421 = vweird.f32 %v414
    %vm422 = vweird.f32 %v416
    %vm423 = vmor %vm421, %vm422
    %v424 = vsel %vm423, %v416, %v420
    %v425 = vand.u32 2147483647, %v414
    %vm426 = vcmp.eq.f32.partialorder %v425, 8.507059e+37
    %v427 = vand.u32 %v414, 2147483648
    %v428 = vor.u32 1.1754944e-38, %v427
    %v429 = vsel %vm426, %v428, %v424
    %v430 = vmul.f32 1.0, %v429
    %v431 = vrcp.pop %v415
    %v432 = vmul.f32 %v415, %v431
    %v433 = vsub.f32 1.0, %v432
    %v434 = vmul.f32 %v431, %v433
    %v435 = vadd.f32 %v431, %v434
    %vm436 = vweird.f32 %v415
    %vm437 = vweird.f32 %v431
    %vm438 = vmor %vm436, %vm437
    %v439 = vsel %vm438, %v431, %v435
    %v440 = vand.u32 2147483647, %v415
    %vm441 = vcmp.eq.f32.partialorder %v440, 8.507059e+37
    %v442 = vand.u32 %v415, 2147483648
    %v443 = vor.u32 1.1754944e-38, %v442
    %v444 = vsel %vm441, %v443, %v439
    %v445 = vmul.f32 1.0, %v444
    %v446 = vmul.f32 %v406, %v430
    %v447 = vmul.f32 %v407, %v445
    %s448 = sld [smem:[#allocation9 + $0x6]]
    %v449 = vstv %s448
    %v450 = vmul.f32 %v446, %v449
    %v451 = vmul.f32 %v447, %v449
    %v452 = vadd.f32 %v398, %v450
    %v453 = vadd.f32 %v399, %v451
    %s454 = sld [smem:[#allocation3 + $0x7]]
    %v455 = vstv %s454
    %v456 = vmul.f32 %v74, %v455
    %v457 = vmul.f32 %v75, %v455
    %s458 = sld [smem:[#allocation7 + $0x7]]
    %v459 = vstv %s458
    %v460 = vadd.f32 %v456, %v459
    %v461 = vadd.f32 %v457, %v459
    %v462 = vxor.u32 %v460, 2147483648
    %v463 = vxor.u32 %v461, 2147483648
    %v464 = vmul.f32 %v462, 1.442695
    %v465 = vpow.pop %v464
    %v466 = vmul.f32 %v463, 1.442695
    %v467 = vpow.pop %v466
    %v468 = vadd.f32 %v465, 1.0
    %v469 = vadd.f32 %v467, 1.0
    %v470 = vrcp.pop %v468
    %v471 = vmul.f32 %v468, %v470
    %v472 = vsub.f32 1.0, %v471
    %v473 = vmul.f32 %v470, %v472
    %v474 = vadd.f32 %v470, %v473
    %vm475 = vweird.f32 %v468
    %vm476 = vweird.f32 %v470
    %vm477 = vmor %vm475, %vm476
    %v478 = vsel %vm477, %v470, %v474
    %v479 = vand.u32 2147483647, %v468
    %vm480 = vcmp.eq.f32.partialorder %v479, 8.507059e+37
    %v481 = vand.u32 %v468, 2147483648
    %v482 = vor.u32 1.1754944e-38, %v481
    %v483 = vsel %vm480, %v482, %v478
    %v484 = vmul.f32 1.0, %v483
    %v485 = vrcp.pop %v469
    %v486 = vmul.f32 %v469, %v485
    %v487 = vsub.f32 1.0, %v486
    %v488 = vmul.f32 %v485, %v487
    %v489 = vadd.f32 %v485, %v488
    %vm490 = vweird.f32 %v469
    %vm491 = vweird.f32 %v485
    %vm492 = vmor %vm490, %vm491
    %v493 = vsel %vm492, %v485, %v489
    %v494 = vand.u32 2147483647, %v469
    %vm495 = vcmp.eq.f32.partialorder %v494, 8.507059e+37
    %v496 = vand.u32 %v469, 2147483648
    %v497 = vor.u32 1.1754944e-38, %v496
    %v498 = vsel %vm495, %v497, %v493
    %v499 = vmul.f32 1.0, %v498
    %v500 = vmul.f32 %v460, %v484
    %v501 = vmul.f32 %v461, %v499
    %s502 = sld [smem:[#allocation9 + $0x7]]
    %v503 = vstv %s502
    %v504 = vmul.f32 %v500, %v503
    %v505 = vmul.f32 %v501, %v503
    %v506 = vadd.f32 %v452, %v504
    %v507 = vadd.f32 %v453, %v505
    %s508 = sld [smem:[#allocation3 + $0x8]]
    %v509 = vstv %s508
    %v510 = vmul.f32 %v74, %v509
    %v511 = vmul.f32 %v75, %v509
    %s512 = sld [smem:[#allocation7 + $0x8]]
    %v513 = vstv %s512
    %v514 = vadd.f32 %v510, %v513
    %v515 = vadd.f32 %v511, %v513
    %v516 = vxor.u32 %v514, 2147483648
    %v517 = vxor.u32 %v515, 2147483648
    %v518 = vmul.f32 %v516, 1.442695
    %v519 = vpow.pop %v518
    %v520 = vmul.f32 %v517, 1.442695
    %v521 = vpow.pop %v520
    %v522 = vadd.f32 %v519, 1.0
    %v523 = vadd.f32 %v521, 1.0
    %v524 = vrcp.pop %v522
    %v525 = vmul.f32 %v522, %v524
    %v526 = vsub.f32 1.0, %v525
    %v527 = vmul.f32 %v524, %v526
    %v528 = vadd.f32 %v524, %v527
    %vm529 = vweird.f32 %v522
    %vm530 = vweird.f32 %v524
    %vm531 = vmor %vm529, %vm530
    %v532 = vsel %vm531, %v524, %v528
    %v533 = vand.u32 2147483647, %v522
    %vm534 = vcmp.eq.f32.partialorder %v533, 8.507059e+37
    %v535 = vand.u32 %v522, 2147483648
    %v536 = vor.u32 1.1754944e-38, %v535
    %v537 = vsel %vm534, %v536, %v532
    %v538 = vmul.f32 1.0, %v537
    %v539 = vrcp.pop %v523
    %v540 = vmul.f32 %v523, %v539
    %v541 = vsub.f32 1.0, %v540
    %v542 = vmul.f32 %v539, %v541
    %v543 = vadd.f32 %v539, %v542
    %vm544 = vweird.f32 %v523
    %vm545 = vweird.f32 %v539
    %vm546 = vmor %vm544, %vm545
    %v547 = vsel %vm546, %v539, %v543
    %v548 = vand.u32 2147483647, %v523
    %vm549 = vcmp.eq.f32.partialorder %v548, 8.507059e+37
    %v550 = vand.u32 %v523, 2147483648
    %v551 = vor.u32 1.1754944e-38, %v550
    %v552 = vsel %vm549, %v551, %v547
    %v553 = vmul.f32 1.0, %v552
    %v554 = vmul.f32 %v514, %v538
    %v555 = vmul.f32 %v515, %v553
    %s556 = sld [smem:[#allocation9 + $0x8]]
    %v557 = vstv %s556
    %v558 = vmul.f32 %v554, %v557
    %v559 = vmul.f32 %v555, %v557
    %v560 = vadd.f32 %v506, %v558
    %v561 = vadd.f32 %v507, %v559
    %s562 = sld [smem:[#allocation3 + $0x9]]
    %v563 = vstv %s562
    %v564 = vmul.f32 %v74, %v563
    %v565 = vmul.f32 %v75, %v563
    %s566 = sld [smem:[#allocation7 + $0x9]]
    %v567 = vstv %s566
    %v568 = vadd.f32 %v564, %v567
    %v569 = vadd.f32 %v565, %v567
    %v570 = vxor.u32 %v568, 2147483648
    %v571 = vxor.u32 %v569, 2147483648
    %v572 = vmul.f32 %v570, 1.442695
    %v573 = vpow.pop %v572
    %v574 = vmul.f32 %v571, 1.442695
    %v575 = vpow.pop %v574
    %v576 = vadd.f32 %v573, 1.0
    %v577 = vadd.f32 %v575, 1.0
    %v578 = vrcp.pop %v576
    %v579 = vmul.f32 %v576, %v578
    %v580 = vsub.f32 1.0, %v579
    %v581 = vmul.f32 %v578, %v580
    %v582 = vadd.f32 %v578, %v581
    %vm583 = vweird.f32 %v576
    %vm584 = vweird.f32 %v578
    %vm585 = vmor %vm583, %vm584
    %v586 = vsel %vm585, %v578, %v582
    %v587 = vand.u32 2147483647, %v576
    %vm588 = vcmp.eq.f32.partialorder %v587, 8.507059e+37
    %v589 = vand.u32 %v576, 2147483648
    %v590 = vor.u32 1.1754944e-38, %v589
    %v591 = vsel %vm588, %v590, %v586
    %v592 = vmul.f32 1.0, %v591
    %v593 = vrcp.pop %v577
    %v594 = vmul.f32 %v577, %v593
    %v595 = vsub.f32 1.0, %v594
    %v596 = vmul.f32 %v593, %v595
    %v597 = vadd.f32 %v593, %v596
    %vm598 = vweird.f32 %v577
    %vm599 = vweird.f32 %v593
    %vm600 = vmor %vm598, %vm599
    %v601 = vsel %vm600, %v593, %v597
    %v602 = vand.u32 2147483647, %v577
    %vm603 = vcmp.eq.f32.partialorder %v602, 8.507059e+37
    %v604 = vand.u32 %v577, 2147483648
    %v605 = vor.u32 1.1754944e-38, %v604
    %v606 = vsel %vm603, %v605, %v601
    %v607 = vmul.f32 1.0, %v606
    %v608 = vmul.f32 %v568, %v592
    %v609 = vmul.f32 %v569, %v607
    %s610 = sld [smem:[#allocation9 + $0x9]]
    %v611 = vstv %s610
    %v612 = vmul.f32 %v608, %v611
    %v613 = vmul.f32 %v609, %v611
    %v614 = vadd.f32 %v560, %v612
    %v615 = vadd.f32 %v561, %v613
    %s616 = sld [smem:[#allocation3 + $0xa]]
    %v617 = vstv %s616
    %v618 = vmul.f32 %v74, %v617
    %v619 = vmul.f32 %v75, %v617
    %s620 = sld [smem:[#allocation7 + $0xa]]
    %v621 = vstv %s620
    %v622 = vadd.f32 %v618, %v621
    %v623 = vadd.f32 %v619, %v621
    %v624 = vxor.u32 %v622, 2147483648
    %v625 = vxor.u32 %v623, 2147483648
    %v626 = vmul.f32 %v624, 1.442695
    %v627 = vpow.pop %v626
    %v628 = vmul.f32 %v625, 1.442695
    %v629 = vpow.pop %v628
    %v630 = vadd.f32 %v627, 1.0
    %v631 = vadd.f32 %v629, 1.0
    %v632 = vrcp.pop %v630
    %v633 = vmul.f32 %v630, %v632
    %v634 = vsub.f32 1.0, %v633
    %v635 = vmul.f32 %v632, %v634
    %v636 = vadd.f32 %v632, %v635
    %vm637 = vweird.f32 %v630
    %vm638 = vweird.f32 %v632
    %vm639 = vmor %vm637, %vm638
    %v640 = vsel %vm639, %v632, %v636
    %v641 = vand.u32 2147483647, %v630
    %vm642 = vcmp.eq.f32.partialorder %v641, 8.507059e+37
    %v643 = vand.u32 %v630, 2147483648
    %v644 = vor.u32 1.1754944e-38, %v643
    %v645 = vsel %vm642, %v644, %v640
    %v646 = vmul.f32 1.0, %v645
    %v647 = vrcp.pop %v631
    %v648 = vmul.f32 %v631, %v647
    %v649 = vsub.f32 1.0, %v648
    %v650 = vmul.f32 %v647, %v649
    %v651 = vadd.f32 %v647, %v650
    %vm652 = vweird.f32 %v631
    %vm653 = vweird.f32 %v647
    %vm654 = vmor %vm652, %vm653
    %v655 = vsel %vm654, %v647, %v651
    %v656 = vand.u32 2147483647, %v631
    %vm657 = vcmp.eq.f32.partialorder %v656, 8.507059e+37
    %v658 = vand.u32 %v631, 2147483648
    %v659 = vor.u32 1.1754944e-38, %v658
    %v660 = vsel %vm657, %v659, %v655
    %v661 = vmul.f32 1.0, %v660
    %v662 = vmul.f32 %v622, %v646
    %v663 = vmul.f32 %v623, %v661
    %s664 = sld [smem:[#allocation9 + $0xa]]
    %v665 = vstv %s664
    %v666 = vmul.f32 %v662, %v665
    %v667 = vmul.f32 %v663, %v665
    %v668 = vadd.f32 %v614, %v666
    %v669 = vadd.f32 %v615, %v667
    %s670 = sld [smem:[#allocation3 + $0xb]]
    %v671 = vstv %s670
    %v672 = vmul.f32 %v74, %v671
    %v673 = vmul.f32 %v75, %v671
    %s674 = sld [smem:[#allocation7 + $0xb]]
    %v675 = vstv %s674
    %v676 = vadd.f32 %v672, %v675
    %v677 = vadd.f32 %v673, %v675
    %v678 = vxor.u32 %v676, 2147483648
    %v679 = vxor.u32 %v677, 2147483648
    %v680 = vmul.f32 %v678, 1.442695
    %v681 = vpow.pop %v680
    %v682 = vmul.f32 %v679, 1.442695
    %v683 = vpow.pop %v682
    %v684 = vadd.f32 %v681, 1.0
    %v685 = vadd.f32 %v683, 1.0
    %v686 = vrcp.pop %v684
    %v687 = vmul.f32 %v684, %v686
    %v688 = vsub.f32 1.0, %v687
    %v689 = vmul.f32 %v686, %v688
    %v690 = vadd.f32 %v686, %v689
    %vm691 = vweird.f32 %v684
    %vm692 = vweird.f32 %v686
    %vm693 = vmor %vm691, %vm692
    %v694 = vsel %vm693, %v686, %v690
    %v695 = vand.u32 2147483647, %v684
    %vm696 = vcmp.eq.f32.partialorder %v695, 8.507059e+37
    %v697 = vand.u32 %v684, 2147483648
    %v698 = vor.u32 1.1754944e-38, %v697
    %v699 = vsel %vm696, %v698, %v694
    %v700 = vmul.f32 1.0, %v699
    %v701 = vrcp.pop %v685
    %v702 = vmul.f32 %v685, %v701
    %v703 = vsub.f32 1.0, %v702
    %v704 = vmul.f32 %v701, %v703
    %v705 = vadd.f32 %v701, %v704
    %vm706 = vweird.f32 %v685
    %vm707 = vweird.f32 %v701
    %vm708 = vmor %vm706, %vm707
    %v709 = vsel %vm708, %v701, %v705
    %v710 = vand.u32 2147483647, %v685
    %vm711 = vcmp.eq.f32.partialorder %v710, 8.507059e+37
    %v712 = vand.u32 %v685, 2147483648
    %v713 = vor.u32 1.1754944e-38, %v712
    %v714 = vsel %vm711, %v713, %v709
    %v715 = vmul.f32 1.0, %v714
    %v716 = vmul.f32 %v676, %v700
    %v717 = vmul.f32 %v677, %v715
    %s718 = sld [smem:[#allocation9 + $0xb]]
    %v719 = vstv %s718
    %v720 = vmul.f32 %v716, %v719
    %v721 = vmul.f32 %v717, %v719
    %v722 = vadd.f32 %v668, %v720
    %v723 = vadd.f32 %v669, %v721
    %s724 = sld [smem:[#allocation3 + $0xc]]
    %v725 = vstv %s724
    %v726 = vmul.f32 %v74, %v725
    %v727 = vmul.f32 %v75, %v725
    %s728 = sld [smem:[#allocation7 + $0xc]]
    %v729 = vstv %s728
    %v730 = vadd.f32 %v726, %v729
    %v731 = vadd.f32 %v727, %v729
    %v732 = vxor.u32 %v730, 2147483648
    %v733 = vxor.u32 %v731, 2147483648
    %v734 = vmul.f32 %v732, 1.442695
    %v735 = vpow.pop %v734
    %v736 = vmul.f32 %v733, 1.442695
    %v737 = vpow.pop %v736
    %v738 = vadd.f32 %v735, 1.0
    %v739 = vadd.f32 %v737, 1.0
    %v740 = vrcp.pop %v738
    %v741 = vmul.f32 %v738, %v740
    %v742 = vsub.f32 1.0, %v741
    %v743 = vmul.f32 %v740, %v742
    %v744 = vadd.f32 %v740, %v743
    %vm745 = vweird.f32 %v738
    %vm746 = vweird.f32 %v740
    %vm747 = vmor %vm745, %vm746
    %v748 = vsel %vm747, %v740, %v744
    %v749 = vand.u32 2147483647, %v738
    %vm750 = vcmp.eq.f32.partialorder %v749, 8.507059e+37
    %v751 = vand.u32 %v738, 2147483648
    %v752 = vor.u32 1.1754944e-38, %v751
    %v753 = vsel %vm750, %v752, %v748
    %v754 = vmul.f32 1.0, %v753
    %v755 = vrcp.pop %v739
    %v756 = vmul.f32 %v739, %v755
    %v757 = vsub.f32 1.0, %v756
    %v758 = vmul.f32 %v755, %v757
    %v759 = vadd.f32 %v755, %v758
    %vm760 = vweird.f32 %v739
    %vm761 = vweird.f32 %v755
    %vm762 = vmor %vm760, %vm761
    %v763 = vsel %vm762, %v755, %v759
    %v764 = vand.u32 2147483647, %v739
    %vm765 = vcmp.eq.f32.partialorder %v764, 8.507059e+37
    %v766 = vand.u32 %v739, 2147483648
    %v767 = vor.u32 1.1754944e-38, %v766
    %v768 = vsel %vm765, %v767, %v763
    %v769 = vmul.f32 1.0, %v768
    %v770 = vmul.f32 %v730, %v754
    %v771 = vmul.f32 %v731, %v769
    %s772 = sld [smem:[#allocation9 + $0xc]]
    %v773 = vstv %s772
    %v774 = vmul.f32 %v770, %v773
    %v775 = vmul.f32 %v771, %v773
    %v776 = vadd.f32 %v722, %v774
    %v777 = vadd.f32 %v723, %v775
    %s778 = sld [smem:[#allocation3 + $0xd]]
    %v779 = vstv %s778
    %v780 = vmul.f32 %v74, %v779
    %v781 = vmul.f32 %v75, %v779
    %s782 = sld [smem:[#allocation7 + $0xd]]
    %v783 = vstv %s782
    %v784 = vadd.f32 %v780, %v783
    %v785 = vadd.f32 %v781, %v783
    %v786 = vxor.u32 %v784, 2147483648
    %v787 = vxor.u32 %v785, 2147483648
    %v788 = vmul.f32 %v786, 1.442695
    %v789 = vpow.pop %v788
    %v790 = vmul.f32 %v787, 1.442695
    %v791 = vpow.pop %v790
    %v792 = vadd.f32 %v789, 1.0
    %v793 = vadd.f32 %v791, 1.0
    %v794 = vrcp.pop %v792
    %v795 = vmul.f32 %v792, %v794
    %v796 = vsub.f32 1.0, %v795
    %v797 = vmul.f32 %v794, %v796
    %v798 = vadd.f32 %v794, %v797
    %vm799 = vweird.f32 %v792
    %vm800 = vweird.f32 %v794
    %vm801 = vmor %vm799, %vm800
    %v802 = vsel %vm801, %v794, %v798
    %v803 = vand.u32 2147483647, %v792
    %vm804 = vcmp.eq.f32.partialorder %v803, 8.507059e+37
    %v805 = vand.u32 %v792, 2147483648
    %v806 = vor.u32 1.1754944e-38, %v805
    %v807 = vsel %vm804, %v806, %v802
    %v808 = vmul.f32 1.0, %v807
    %v809 = vrcp.pop %v793
    %v810 = vmul.f32 %v793, %v809
    %v811 = vsub.f32 1.0, %v810
    %v812 = vmul.f32 %v809, %v811
    %v813 = vadd.f32 %v809, %v812
    %vm814 = vweird.f32 %v793
    %vm815 = vweird.f32 %v809
    %vm816 = vmor %vm814, %vm815
    %v817 = vsel %vm816, %v809, %v813
    %v818 = vand.u32 2147483647, %v793
    %vm819 = vcmp.eq.f32.partialorder %v818, 8.507059e+37
    %v820 = vand.u32 %v793, 2147483648
    %v821 = vor.u32 1.1754944e-38, %v820
    %v822 = vsel %vm819, %v821, %v817
    %v823 = vmul.f32 1.0, %v822
    %v824 = vmul.f32 %v784, %v808
    %v825 = vmul.f32 %v785, %v823
    %s826 = sld [smem:[#allocation9 + $0xd]]
    %v827 = vstv %s826
    %v828 = vmul.f32 %v824, %v827
    %v829 = vmul.f32 %v825, %v827
    %v830 = vadd.f32 %v776, %v828
    %v831 = vadd.f32 %v777, %v829
    %s832 = sld [smem:[#allocation3 + $0xe]]
    %v833 = vstv %s832
    %v834 = vmul.f32 %v74, %v833
    %v835 = vmul.f32 %v75, %v833
    %s836 = sld [smem:[#allocation7 + $0xe]]
    %v837 = vstv %s836
    %v838 = vadd.f32 %v834, %v837
    %v839 = vadd.f32 %v835, %v837
    %v840 = vxor.u32 %v838, 2147483648
    %v841 = vxor.u32 %v839, 2147483648
    %v842 = vmul.f32 %v840, 1.442695
    %v843 = vpow.pop %v842
    %v844 = vmul.f32 %v841, 1.442695
    %v845 = vpow.pop %v844
    %v846 = vadd.f32 %v843, 1.0
    %v847 = vadd.f32 %v845, 1.0
    %v848 = vrcp.pop %v846
    %v849 = vmul.f32 %v846, %v848
    %v850 = vsub.f32 1.0, %v849
    %v851 = vmul.f32 %v848, %v850
    %v852 = vadd.f32 %v848, %v851
    %vm853 = vweird.f32 %v846
    %vm854 = vweird.f32 %v848
    %vm855 = vmor %vm853, %vm854
    %v856 = vsel %vm855, %v848, %v852
    %v857 = vand.u32 2147483647, %v846
    %vm858 = vcmp.eq.f32.partialorder %v857, 8.507059e+37
    %v859 = vand.u32 %v846, 2147483648
    %v860 = vor.u32 1.1754944e-38, %v859
    %v861 = vsel %vm858, %v860, %v856
    %v862 = vmul.f32 1.0, %v861
    %v863 = vrcp.pop %v847
    %v864 = vmul.f32 %v847, %v863
    %v865 = vsub.f32 1.0, %v864
    %v866 = vmul.f32 %v863, %v865
    %v867 = vadd.f32 %v863, %v866
    %vm868 = vweird.f32 %v847
    %vm869 = vweird.f32 %v863
    %vm870 = vmor %vm868, %vm869
    %v871 = vsel %vm870, %v863, %v867
    %v872 = vand.u32 2147483647, %v847
    %vm873 = vcmp.eq.f32.partialorder %v872, 8.507059e+37
    %v874 = vand.u32 %v847, 2147483648
    %v875 = vor.u32 1.1754944e-38, %v874
    %v876 = vsel %vm873, %v875, %v871
    %v877 = vmul.f32 1.0, %v876
    %v878 = vmul.f32 %v838, %v862
    %v879 = vmul.f32 %v839, %v877
    %s880 = sld [smem:[#allocation9 + $0xe]]
    %v881 = vstv %s880
    %v882 = vmul.f32 %v878, %v881
    %v883 = vmul.f32 %v879, %v881
    %v884 = vadd.f32 %v830, %v882
    %v885 = vadd.f32 %v831, %v883
    %s886 = sld [smem:[#allocation3 + $0xf]]
    %v887 = vstv %s886
    %v888 = vmul.f32 %v74, %v887
    %v889 = vmul.f32 %v75, %v887
    %s890 = sld [smem:[#allocation7 + $0xf]]
    %v891 = vstv %s890
    %v892 = vadd.f32 %v888, %v891
    %v893 = vadd.f32 %v889, %v891
    %v894 = vxor.u32 %v892, 2147483648
    %v895 = vxor.u32 %v893, 2147483648
    %v896 = vmul.f32 %v894, 1.442695
    %v897 = vpow.pop %v896
    %v898 = vmul.f32 %v895, 1.442695
    %v899 = vpow.pop %v898
    %v900 = vadd.f32 %v897, 1.0
    %v901 = vadd.f32 %v899, 1.0
    %v902 = vrcp.pop %v900
    %v903 = vmul.f32 %v900, %v902
    %v904 = vsub.f32 1.0, %v903
    %v905 = vmul.f32 %v902, %v904
    %v906 = vadd.f32 %v902, %v905
    %vm907 = vweird.f32 %v900
    %vm908 = vweird.f32 %v902
    %vm909 = vmor %vm907, %vm908
    %v910 = vsel %vm909, %v902, %v906
    %v911 = vand.u32 2147483647, %v900
    %vm912 = vcmp.eq.f32.partialorder %v911, 8.507059e+37
    %v913 = vand.u32 %v900, 2147483648
    %v914 = vor.u32 1.1754944e-38, %v913
    %v915 = vsel %vm912, %v914, %v910
    %v916 = vmul.f32 1.0, %v915
    %v917 = vrcp.pop %v901
    %v918 = vmul.f32 %v901, %v917
    %v919 = vsub.f32 1.0, %v918
    %v920 = vmul.f32 %v917, %v919
    %v921 = vadd.f32 %v917, %v920
    %vm922 = vweird.f32 %v901
    %vm923 = vweird.f32 %v917
    %vm924 = vmor %vm922, %vm923
    %v925 = vsel %vm924, %v917, %v921
    %v926 = vand.u32 2147483647, %v901
    %vm927 = vcmp.eq.f32.partialorder %v926, 8.507059e+37
    %v928 = vand.u32 %v901, 2147483648
    %v929 = vor.u32 1.1754944e-38, %v928
    %v930 = vsel %vm927, %v929, %v925
    %v931 = vmul.f32 1.0, %v930
    %v932 = vmul.f32 %v892, %v916
    %v933 = vmul.f32 %v893, %v931
    %s934 = sld [smem:[#allocation9 + $0xf]]
    %v935 = vstv %s934
    %v936 = vmul.f32 %v932, %v935
    %v937 = vmul.f32 %v933, %v935
    %v938 = vadd.f32 %v884, %v936
    %v939 = vadd.f32 %v885, %v937
    %s940 = sld [smem:[#allocation3 + $0x10]]
    %v941 = vstv %s940
    %v942 = vmul.f32 %v74, %v941
    %v943 = vmul.f32 %v75, %v941
    %s944 = sld [smem:[#allocation7 + $0x10]]
    %v945 = vstv %s944
    %v946 = vadd.f32 %v942, %v945
    %v947 = vadd.f32 %v943, %v945
    %v948 = vxor.u32 %v946, 2147483648
    %v949 = vxor.u32 %v947, 2147483648
    %v950 = vmul.f32 %v948, 1.442695
    %v951 = vpow.pop %v950
    %v952 = vmul.f32 %v949, 1.442695
    %v953 = vpow.pop %v952
    %v954 = vadd.f32 %v951, 1.0
    %v955 = vadd.f32 %v953, 1.0
    %v956 = vrcp.pop %v954
    %v957 = vmul.f32 %v954, %v956
    %v958 = vsub.f32 1.0, %v957
    %v959 = vmul.f32 %v956, %v958
    %v960 = vadd.f32 %v956, %v959
    %vm961 = vweird.f32 %v954
    %vm962 = vweird.f32 %v956
    %vm963 = vmor %vm961, %vm962
    %v964 = vsel %vm963, %v956, %v960
    %v965 = vand.u32 2147483647, %v954
    %vm966 = vcmp.eq.f32.partialorder %v965, 8.507059e+37
    %v967 = vand.u32 %v954, 2147483648
    %v968 = vor.u32 1.1754944e-38, %v967
    %v969 = vsel %vm966, %v968, %v964
    %v970 = vmul.f32 1.0, %v969
    %v971 = vrcp.pop %v955
    %v972 = vmul.f32 %v955, %v971
    %v973 = vsub.f32 1.0, %v972
    %v974 = vmul.f32 %v971, %v973
    %v975 = vadd.f32 %v971, %v974
    %vm976 = vweird.f32 %v955
    %vm977 = vweird.f32 %v971
    %vm978 = vmor %vm976, %vm977
    %v979 = vsel %vm978, %v971, %v975
    %v980 = vand.u32 2147483647, %v955
    %vm981 = vcmp.eq.f32.partialorder %v980, 8.507059e+37
    %v982 = vand.u32 %v955, 2147483648
    %v983 = vor.u32 1.1754944e-38, %v982
    %v984 = vsel %vm981, %v983, %v979
    %v985 = vmul.f32 1.0, %v984
    %v986 = vmul.f32 %v946, %v970
    %v987 = vmul.f32 %v947, %v985
    %s988 = sld [smem:[#allocation9 + $0x10]]
    %v989 = vstv %s988
    %v990 = vmul.f32 %v986, %v989
    %v991 = vmul.f32 %v987, %v989
    %v992 = vadd.f32 %v938, %v990
    %v993 = vadd.f32 %v939, %v991
    %s994 = sld [smem:[#allocation3 + $0x11]]
    %v995 = vstv %s994
    %v996 = vmul.f32 %v74, %v995
    %v997 = vmul.f32 %v75, %v995
    %s998 = sld [smem:[#allocation7 + $0x11]]
    %v999 = vstv %s998
    %v1000 = vadd.f32 %v996, %v999
    %v1001 = vadd.f32 %v997, %v999
    %v1002 = vxor.u32 %v1000, 2147483648
    %v1003 = vxor.u32 %v1001, 2147483648
    %v1004 = vmul.f32 %v1002, 1.442695
    %v1005 = vpow.pop %v1004
    %v1006 = vmul.f32 %v1003, 1.442695
    %v1007 = vpow.pop %v1006
    %v1008 = vadd.f32 %v1005, 1.0
    %v1009 = vadd.f32 %v1007, 1.0
    %v1010 = vrcp.pop %v1008
    %v1011 = vmul.f32 %v1008, %v1010
    %v1012 = vsub.f32 1.0, %v1011
    %v1013 = vmul.f32 %v1010, %v1012
    %v1014 = vadd.f32 %v1010, %v1013
    %vm1015 = vweird.f32 %v1008
    %vm1016 = vweird.f32 %v1010
    %vm1017 = vmor %vm1015, %vm1016
    %v1018 = vsel %vm1017, %v1010, %v1014
    %v1019 = vand.u32 2147483647, %v1008
    %vm1020 = vcmp.eq.f32.partialorder %v1019, 8.507059e+37
    %v1021 = vand.u32 %v1008, 2147483648
    %v1022 = vor.u32 1.1754944e-38, %v1021
    %v1023 = vsel %vm1020, %v1022, %v1018
    %v1024 = vmul.f32 1.0, %v1023
    %v1025 = vrcp.pop %v1009
    %v1026 = vmul.f32 %v1009, %v1025
    %v1027 = vsub.f32 1.0, %v1026
    %v1028 = vmul.f32 %v1025, %v1027
    %v1029 = vadd.f32 %v1025, %v1028
    %vm1030 = vweird.f32 %v1009
    %vm1031 = vweird.f32 %v1025
    %vm1032 = vmor %vm1030, %vm1031
    %v1033 = vsel %vm1032, %v1025, %v1029
    %v1034 = vand.u32 2147483647, %v1009
    %vm1035 = vcmp.eq.f32.partialorder %v1034, 8.507059e+37
    %v1036 = vand.u32 %v1009, 2147483648
    %v1037 = vor.u32 1.1754944e-38, %v1036
    %v1038 = vsel %vm1035, %v1037, %v1033
    %v1039 = vmul.f32 1.0, %v1038
    %v1040 = vmul.f32 %v1000, %v1024
    %v1041 = vmul.f32 %v1001, %v1039
    %s1042 = sld [smem:[#allocation9 + $0x11]]
    %v1043 = vstv %s1042
    %v1044 = vmul.f32 %v1040, %v1043
    %v1045 = vmul.f32 %v1041, %v1043
    %v1046 = vadd.f32 %v992, %v1044
    %v1047 = vadd.f32 %v993, %v1045
    %s1048 = sld [smem:[#allocation3 + $0x12]]
    %v1049 = vstv %s1048
    %v1050 = vmul.f32 %v74, %v1049
    %v1051 = vmul.f32 %v75, %v1049
    %s1052 = sld [smem:[#allocation7 + $0x12]]
    %v1053 = vstv %s1052
    %v1054 = vadd.f32 %v1050, %v1053
    %v1055 = vadd.f32 %v1051, %v1053
    %v1056 = vxor.u32 %v1054, 2147483648
    %v1057 = vxor.u32 %v1055, 2147483648
    %v1058 = vmul.f32 %v1056, 1.442695
    %v1059 = vpow.pop %v1058
    %v1060 = vmul.f32 %v1057, 1.442695
    %v1061 = vpow.pop %v1060
    %v1062 = vadd.f32 %v1059, 1.0
    %v1063 = vadd.f32 %v1061, 1.0
    %v1064 = vrcp.pop %v1062
    %v1065 = vmul.f32 %v1062, %v1064
    %v1066 = vsub.f32 1.0, %v1065
    %v1067 = vmul.f32 %v1064, %v1066
    %v1068 = vadd.f32 %v1064, %v1067
    %vm1069 = vweird.f32 %v1062
    %vm1070 = vweird.f32 %v1064
    %vm1071 = vmor %vm1069, %vm1070
    %v1072 = vsel %vm1071, %v1064, %v1068
    %v1073 = vand.u32 2147483647, %v1062
    %vm1074 = vcmp.eq.f32.partialorder %v1073, 8.507059e+37
    %v1075 = vand.u32 %v1062, 2147483648
    %v1076 = vor.u32 1.1754944e-38, %v1075
    %v1077 = vsel %vm1074, %v1076, %v1072
    %v1078 = vmul.f32 1.0, %v1077
    %v1079 = vrcp.pop %v1063
    %v1080 = vmul.f32 %v1063, %v1079
    %v1081 = vsub.f32 1.0, %v1080
    %v1082 = vmul.f32 %v1079, %v1081
    %v1083 = vadd.f32 %v1079, %v1082
    %vm1084 = vweird.f32 %v1063
    %vm1085 = vweird.f32 %v1079
    %vm1086 = vmor %vm1084, %vm1085
    %v1087 = vsel %vm1086, %v1079, %v1083
    %v1088 = vand.u32 2147483647, %v1063
    %vm1089 = vcmp.eq.f32.partialorder %v1088, 8.507059e+37
    %v1090 = vand.u32 %v1063, 2147483648
    %v1091 = vor.u32 1.1754944e-38, %v1090
    %v1092 = vsel %vm1089, %v1091, %v1087
    %v1093 = vmul.f32 1.0, %v1092
    %v1094 = vmul.f32 %v1054, %v1078
    %v1095 = vmul.f32 %v1055, %v1093
    %s1096 = sld [smem:[#allocation9 + $0x12]]
    %v1097 = vstv %s1096
    %v1098 = vmul.f32 %v1094, %v1097
    %v1099 = vmul.f32 %v1095, %v1097
    %v1100 = vadd.f32 %v1046, %v1098
    %v1101 = vadd.f32 %v1047, %v1099
    %s1102 = sld [smem:[#allocation3 + $0x13]]
    %v1103 = vstv %s1102
    %v1104 = vmul.f32 %v74, %v1103
    %v1105 = vmul.f32 %v75, %v1103
    %s1106 = sld [smem:[#allocation7 + $0x13]]
    %v1107 = vstv %s1106
    %v1108 = vadd.f32 %v1104, %v1107
    %v1109 = vadd.f32 %v1105, %v1107
    %v1110 = vxor.u32 %v1108, 2147483648
    %v1111 = vxor.u32 %v1109, 2147483648
    %v1112 = vmul.f32 %v1110, 1.442695
    %v1113 = vpow.pop %v1112
    %v1114 = vmul.f32 %v1111, 1.442695
    %v1115 = vpow.pop %v1114
    %v1116 = vadd.f32 %v1113, 1.0
    %v1117 = vadd.f32 %v1115, 1.0
    %v1118 = vrcp.pop %v1116
    %v1119 = vmul.f32 %v1116, %v1118
    %v1120 = vsub.f32 1.0, %v1119
    %v1121 = vmul.f32 %v1118, %v1120
    %v1122 = vadd.f32 %v1118, %v1121
    %vm1123 = vweird.f32 %v1116
    %vm1124 = vweird.f32 %v1118
    %vm1125 = vmor %vm1123, %vm1124
    %v1126 = vsel %vm1125, %v1118, %v1122
    %v1127 = vand.u32 2147483647, %v1116
    %vm1128 = vcmp.eq.f32.partialorder %v1127, 8.507059e+37
    %v1129 = vand.u32 %v1116, 2147483648
    %v1130 = vor.u32 1.1754944e-38, %v1129
    %v1131 = vsel %vm1128, %v1130, %v1126
    %v1132 = vmul.f32 1.0, %v1131
    %v1133 = vrcp.pop %v1117
    %v1134 = vmul.f32 %v1117, %v1133
    %v1135 = vsub.f32 1.0, %v1134
    %v1136 = vmul.f32 %v1133, %v1135
    %v1137 = vadd.f32 %v1133, %v1136
    %vm1138 = vweird.f32 %v1117
    %vm1139 = vweird.f32 %v1133
    %vm1140 = vmor %vm1138, %vm1139
    %v1141 = vsel %vm1140, %v1133, %v1137
    %v1142 = vand.u32 2147483647, %v1117
    %vm1143 = vcmp.eq.f32.partialorder %v1142, 8.507059e+37
    %v1144 = vand.u32 %v1117, 2147483648
    %v1145 = vor.u32 1.1754944e-38, %v1144
    %v1146 = vsel %vm1143, %v1145, %v1141
    %v1147 = vmul.f32 1.0, %v1146
    %v1148 = vmul.f32 %v1108, %v1132
    %v1149 = vmul.f32 %v1109, %v1147
    %s1150 = sld [smem:[#allocation9 + $0x13]]
    %v1151 = vstv %s1150
    %v1152 = vmul.f32 %v1148, %v1151
    %v1153 = vmul.f32 %v1149, %v1151
    %v1154 = vadd.f32 %v1100, %v1152
    %v1155 = vadd.f32 %v1101, %v1153
    %s1156 = sld [smem:[#allocation3 + $0x14]]
    %v1157 = vstv %s1156
    %v1158 = vmul.f32 %v74, %v1157
    %v1159 = vmul.f32 %v75, %v1157
    %s1160 = sld [smem:[#allocation7 + $0x14]]
    %v1161 = vstv %s1160
    %v1162 = vadd.f32 %v1158, %v1161
    %v1163 = vadd.f32 %v1159, %v1161
    %v1164 = vxor.u32 %v1162, 2147483648
    %v1165 = vxor.u32 %v1163, 2147483648
    %v1166 = vmul.f32 %v1164, 1.442695
    %v1167 = vpow.pop %v1166
    %v1168 = vmul.f32 %v1165, 1.442695
    %v1169 = vpow.pop %v1168
    %v1170 = vadd.f32 %v1167, 1.0
    %v1171 = vadd.f32 %v1169, 1.0
    %v1172 = vrcp.pop %v1170
    %v1173 = vmul.f32 %v1170, %v1172
    %v1174 = vsub.f32 1.0, %v1173
    %v1175 = vmul.f32 %v1172, %v1174
    %v1176 = vadd.f32 %v1172, %v1175
    %vm1177 = vweird.f32 %v1170
    %vm1178 = vweird.f32 %v1172
    %vm1179 = vmor %vm1177, %vm1178
    %v1180 = vsel %vm1179, %v1172, %v1176
    %v1181 = vand.u32 2147483647, %v1170
    %vm1182 = vcmp.eq.f32.partialorder %v1181, 8.507059e+37
    %v1183 = vand.u32 %v1170, 2147483648
    %v1184 = vor.u32 1.1754944e-38, %v1183
    %v1185 = vsel %vm1182, %v1184, %v1180
    %v1186 = vmul.f32 1.0, %v1185
    %v1187 = vrcp.pop %v1171
    %v1188 = vmul.f32 %v1171, %v1187
    %v1189 = vsub.f32 1.0, %v1188
    %v1190 = vmul.f32 %v1187, %v1189
    %v1191 = vadd.f32 %v1187, %v1190
    %vm1192 = vweird.f32 %v1171
    %vm1193 = vweird.f32 %v1187
    %vm1194 = vmor %vm1192, %vm1193
    %v1195 = vsel %vm1194, %v1187, %v1191
    %v1196 = vand.u32 2147483647, %v1171
    %vm1197 = vcmp.eq.f32.partialorder %v1196, 8.507059e+37
    %v1198 = vand.u32 %v1171, 2147483648
    %v1199 = vor.u32 1.1754944e-38, %v1198
    %v1200 = vsel %vm1197, %v1199, %v1195
    %v1201 = vmul.f32 1.0, %v1200
    %v1202 = vmul.f32 %v1162, %v1186
    %v1203 = vmul.f32 %v1163, %v1201
    %s1204 = sld [smem:[#allocation9 + $0x14]]
    %v1205 = vstv %s1204
    %v1206 = vmul.f32 %v1202, %v1205
    %v1207 = vmul.f32 %v1203, %v1205
    %v1208 = vadd.f32 %v1154, %v1206
    %v1209 = vadd.f32 %v1155, %v1207
    %s1210 = sld [smem:[#allocation3 + $0x15]]
    %v1211 = vstv %s1210
    %v1212 = vmul.f32 %v74, %v1211
    %v1213 = vmul.f32 %v75, %v1211
    %s1214 = sld [smem:[#allocation7 + $0x15]]
    %v1215 = vstv %s1214
    %v1216 = vadd.f32 %v1212, %v1215
    %v1217 = vadd.f32 %v1213, %v1215
    %v1218 = vxor.u32 %v1216, 2147483648
    %v1219 = vxor.u32 %v1217, 2147483648
    %v1220 = vmul.f32 %v1218, 1.442695
    %v1221 = vpow.pop %v1220
    %v1222 = vmul.f32 %v1219, 1.442695
    %v1223 = vpow.pop %v1222
    %v1224 = vadd.f32 %v1221, 1.0
    %v1225 = vadd.f32 %v1223, 1.0
    %v1226 = vrcp.pop %v1224
    %v1227 = vmul.f32 %v1224, %v1226
    %v1228 = vsub.f32 1.0, %v1227
    %v1229 = vmul.f32 %v1226, %v1228
    %v1230 = vadd.f32 %v1226, %v1229
    %vm1231 = vweird.f32 %v1224
    %vm1232 = vweird.f32 %v1226
    %vm1233 = vmor %vm1231, %vm1232
    %v1234 = vsel %vm1233, %v1226, %v1230
    %v1235 = vand.u32 2147483647, %v1224
    %vm1236 = vcmp.eq.f32.partialorder %v1235, 8.507059e+37
    %v1237 = vand.u32 %v1224, 2147483648
    %v1238 = vor.u32 1.1754944e-38, %v1237
    %v1239 = vsel %vm1236, %v1238, %v1234
    %v1240 = vmul.f32 1.0, %v1239
    %v1241 = vrcp.pop %v1225
    %v1242 = vmul.f32 %v1225, %v1241
    %v1243 = vsub.f32 1.0, %v1242
    %v1244 = vmul.f32 %v1241, %v1243
    %v1245 = vadd.f32 %v1241, %v1244
    %vm1246 = vweird.f32 %v1225
    %vm1247 = vweird.f32 %v1241
    %vm1248 = vmor %vm1246, %vm1247
    %v1249 = vsel %vm1248, %v1241, %v1245
    %v1250 = vand.u32 2147483647, %v1225
    %vm1251 = vcmp.eq.f32.partialorder %v1250, 8.507059e+37
    %v1252 = vand.u32 %v1225, 2147483648
    %v1253 = vor.u32 1.1754944e-38, %v1252
    %v1254 = vsel %vm1251, %v1253, %v1249
    %v1255 = vmul.f32 1.0, %v1254
    %v1256 = vmul.f32 %v1216, %v1240
    %v1257 = vmul.f32 %v1217, %v1255
    %s1258 = sld [smem:[#allocation9 + $0x15]]
    %v1259 = vstv %s1258
    %v1260 = vmul.f32 %v1256, %v1259
    %v1261 = vmul.f32 %v1257, %v1259
    %v1262 = vadd.f32 %v1208, %v1260
    %v1263 = vadd.f32 %v1209, %v1261
    %s1264 = sld [smem:[#allocation3 + $0x16]]
    %v1265 = vstv %s1264
    %v1266 = vmul.f32 %v74, %v1265
    %v1267 = vmul.f32 %v75, %v1265
    %s1268 = sld [smem:[#allocation7 + $0x16]]
    %v1269 = vstv %s1268
    %v1270 = vadd.f32 %v1266, %v1269
    %v1271 = vadd.f32 %v1267, %v1269
    %v1272 = vxor.u32 %v1270, 2147483648
    %v1273 = vxor.u32 %v1271, 2147483648
    %v1274 = vmul.f32 %v1272, 1.442695
    %v1275 = vpow.pop %v1274
    %v1276 = vmul.f32 %v1273, 1.442695
    %v1277 = vpow.pop %v1276
    %v1278 = vadd.f32 %v1275, 1.0
    %v1279 = vadd.f32 %v1277, 1.0
    %v1280 = vrcp.pop %v1278
    %v1281 = vmul.f32 %v1278, %v1280
    %v1282 = vsub.f32 1.0, %v1281
    %v1283 = vmul.f32 %v1280, %v1282
    %v1284 = vadd.f32 %v1280, %v1283
    %vm1285 = vweird.f32 %v1278
    %vm1286 = vweird.f32 %v1280
    %vm1287 = vmor %vm1285, %vm1286
    %v1288 = vsel %vm1287, %v1280, %v1284
    %v1289 = vand.u32 2147483647, %v1278
    %vm1290 = vcmp.eq.f32.partialorder %v1289, 8.507059e+37
    %v1291 = vand.u32 %v1278, 2147483648
    %v1292 = vor.u32 1.1754944e-38, %v1291
    %v1293 = vsel %vm1290, %v1292, %v1288
    %v1294 = vmul.f32 1.0, %v1293
    %v1295 = vrcp.pop %v1279
    %v1296 = vmul.f32 %v1279, %v1295
    %v1297 = vsub.f32 1.0, %v1296
    %v1298 = vmul.f32 %v1295, %v1297
    %v1299 = vadd.f32 %v1295, %v1298
    %vm1300 = vweird.f32 %v1279
    %vm1301 = vweird.f32 %v1295
    %vm1302 = vmor %vm1300, %vm1301
    %v1303 = vsel %vm1302, %v1295, %v1299
    %v1304 = vand.u32 2147483647, %v1279
    %vm1305 = vcmp.eq.f32.partialorder %v1304, 8.507059e+37
    %v1306 = vand.u32 %v1279, 2147483648
    %v1307 = vor.u32 1.1754944e-38, %v1306
    %v1308 = vsel %vm1305, %v1307, %v1303
    %v1309 = vmul.f32 1.0, %v1308
    %v1310 = vmul.f32 %v1270, %v1294
    %v1311 = vmul.f32 %v1271, %v1309
    %s1312 = sld [smem:[#allocation9 + $0x16]]
    %v1313 = vstv %s1312
    %v1314 = vmul.f32 %v1310, %v1313
    %v1315 = vmul.f32 %v1311, %v1313
    %v1316 = vadd.f32 %v1262, %v1314
    %v1317 = vadd.f32 %v1263, %v1315
    %s1318 = sld [smem:[#allocation3 + $0x17]]
    %v1319 = vstv %s1318
    %v1320 = vmul.f32 %v74, %v1319
    %v1321 = vmul.f32 %v75, %v1319
    %s1322 = sld [smem:[#allocation7 + $0x17]]
    %v1323 = vstv %s1322
    %v1324 = vadd.f32 %v1320, %v1323
    %v1325 = vadd.f32 %v1321, %v1323
    %v1326 = vxor.u32 %v1324, 2147483648
    %v1327 = vxor.u32 %v1325, 2147483648
    %v1328 = vmul.f32 %v1326, 1.442695
    %v1329 = vpow.pop %v1328
    %v1330 = vmul.f32 %v1327, 1.442695
    %v1331 = vpow.pop %v1330
    %v1332 = vadd.f32 %v1329, 1.0
    %v1333 = vadd.f32 %v1331, 1.0
    %v1334 = vrcp.pop %v1332
    %v1335 = vmul.f32 %v1332, %v1334
    %v1336 = vsub.f32 1.0, %v1335
    %v1337 = vmul.f32 %v1334, %v1336
    %v1338 = vadd.f32 %v1334, %v1337
    %vm1339 = vweird.f32 %v1332
    %vm1340 = vweird.f32 %v1334
    %vm1341 = vmor %vm1339, %vm1340
    %v1342 = vsel %vm1341, %v1334, %v1338
    %v1343 = vand.u32 2147483647, %v1332
    %vm1344 = vcmp.eq.f32.partialorder %v1343, 8.507059e+37
    %v1345 = vand.u32 %v1332, 2147483648
    %v1346 = vor.u32 1.1754944e-38, %v1345
    %v1347 = vsel %vm1344, %v1346, %v1342
    %v1348 = vmul.f32 1.0, %v1347
    %v1349 = vrcp.pop %v1333
    %v1350 = vmul.f32 %v1333, %v1349
    %v1351 = vsub.f32 1.0, %v1350
    %v1352 = vmul.f32 %v1349, %v1351
    %v1353 = vadd.f32 %v1349, %v1352
    %vm1354 = vweird.f32 %v1333
    %vm1355 = vweird.f32 %v1349
    %vm1356 = vmor %vm1354, %vm1355
    %v1357 = vsel %vm1356, %v1349, %v1353
    %v1358 = vand.u32 2147483647, %v1333
    %vm1359 = vcmp.eq.f32.partialorder %v1358, 8.507059e+37
    %v1360 = vand.u32 %v1333, 2147483648
    %v1361 = vor.u32 1.1754944e-38, %v1360
    %v1362 = vsel %vm1359, %v1361, %v1357
    %v1363 = vmul.f32 1.0, %v1362
    %v1364 = vmul.f32 %v1324, %v1348
    %v1365 = vmul.f32 %v1325, %v1363
    %s1366 = sld [smem:[#allocation9 + $0x17]]
    %v1367 = vstv %s1366
    %v1368 = vmul.f32 %v1364, %v1367
    %v1369 = vmul.f32 %v1365, %v1367
    %v1370 = vadd.f32 %v1316, %v1368
    %v1371 = vadd.f32 %v1317, %v1369
    %s1372 = sld [smem:[#allocation3 + $0x18]]
    %v1373 = vstv %s1372
    %v1374 = vmul.f32 %v74, %v1373
    %v1375 = vmul.f32 %v75, %v1373
    %s1376 = sld [smem:[#allocation7 + $0x18]]
    %v1377 = vstv %s1376
    %v1378 = vadd.f32 %v1374, %v1377
    %v1379 = vadd.f32 %v1375, %v1377
    %v1380 = vxor.u32 %v1378, 2147483648
    %v1381 = vxor.u32 %v1379, 2147483648
    %v1382 = vmul.f32 %v1380, 1.442695
    %v1383 = vpow.pop %v1382
    %v1384 = vmul.f32 %v1381, 1.442695
    %v1385 = vpow.pop %v1384
    %v1386 = vadd.f32 %v1383, 1.0
    %v1387 = vadd.f32 %v1385, 1.0
    %v1388 = vrcp.pop %v1386
    %v1389 = vmul.f32 %v1386, %v1388
    %v1390 = vsub.f32 1.0, %v1389
    %v1391 = vmul.f32 %v1388, %v1390
    %v1392 = vadd.f32 %v1388, %v1391
    %vm1393 = vweird.f32 %v1386
    %vm1394 = vweird.f32 %v1388
    %vm1395 = vmor %vm1393, %vm1394
    %v1396 = vsel %vm1395, %v1388, %v1392
    %v1397 = vand.u32 2147483647, %v1386
    %vm1398 = vcmp.eq.f32.partialorder %v1397, 8.507059e+37
    %v1399 = vand.u32 %v1386, 2147483648
    %v1400 = vor.u32 1.1754944e-38, %v1399
    %v1401 = vsel %vm1398, %v1400, %v1396
    %v1402 = vmul.f32 1.0, %v1401
    %v1403 = vrcp.pop %v1387
    %v1404 = vmul.f32 %v1387, %v1403
    %v1405 = vsub.f32 1.0, %v1404
    %v1406 = vmul.f32 %v1403, %v1405
    %v1407 = vadd.f32 %v1403, %v1406
    %vm1408 = vweird.f32 %v1387
    %vm1409 = vweird.f32 %v1403
    %vm1410 = vmor %vm1408, %vm1409
    %v1411 = vsel %vm1410, %v1403, %v1407
    %v1412 = vand.u32 2147483647, %v1387
    %vm1413 = vcmp.eq.f32.partialorder %v1412, 8.507059e+37
    %v1414 = vand.u32 %v1387, 2147483648
    %v1415 = vor.u32 1.1754944e-38, %v1414
    %v1416 = vsel %vm1413, %v1415, %v1411
    %v1417 = vmul.f32 1.0, %v1416
    %v1418 = vmul.f32 %v1378, %v1402
    %v1419 = vmul.f32 %v1379, %v1417
    %s1420 = sld [smem:[#allocation9 + $0x18]]
    %v1421 = vstv %s1420
    %v1422 = vmul.f32 %v1418, %v1421
    %v1423 = vmul.f32 %v1419, %v1421
    %v1424 = vadd.f32 %v1370, %v1422
    %v1425 = vadd.f32 %v1371, %v1423
    %s1426 = sld [smem:[#allocation3 + $0x19]]
    %v1427 = vstv %s1426
    %v1428 = vmul.f32 %v74, %v1427
    %v1429 = vmul.f32 %v75, %v1427
    %s1430 = sld [smem:[#allocation7 + $0x19]]
    %v1431 = vstv %s1430
    %v1432 = vadd.f32 %v1428, %v1431
    %v1433 = vadd.f32 %v1429, %v1431
    %v1434 = vxor.u32 %v1432, 2147483648
    %v1435 = vxor.u32 %v1433, 2147483648
    %v1436 = vmul.f32 %v1434, 1.442695
    %v1437 = vpow.pop %v1436
    %v1438 = vmul.f32 %v1435, 1.442695
    %v1439 = vpow.pop %v1438
    %v1440 = vadd.f32 %v1437, 1.0
    %v1441 = vadd.f32 %v1439, 1.0
    %v1442 = vrcp.pop %v1440
    %v1443 = vmul.f32 %v1440, %v1442
    %v1444 = vsub.f32 1.0, %v1443
    %v1445 = vmul.f32 %v1442, %v1444
    %v1446 = vadd.f32 %v1442, %v1445
    %vm1447 = vweird.f32 %v1440
    %vm1448 = vweird.f32 %v1442
    %vm1449 = vmor %vm1447, %vm1448
    %v1450 = vsel %vm1449, %v1442, %v1446
    %v1451 = vand.u32 2147483647, %v1440
    %vm1452 = vcmp.eq.f32.partialorder %v1451, 8.507059e+37
    %v1453 = vand.u32 %v1440, 2147483648
    %v1454 = vor.u32 1.1754944e-38, %v1453
    %v1455 = vsel %vm1452, %v1454, %v1450
    %v1456 = vmul.f32 1.0, %v1455
    %v1457 = vrcp.pop %v1441
    %v1458 = vmul.f32 %v1441, %v1457
    %v1459 = vsub.f32 1.0, %v1458
    %v1460 = vmul.f32 %v1457, %v1459
    %v1461 = vadd.f32 %v1457, %v1460
    %vm1462 = vweird.f32 %v1441
    %vm1463 = vweird.f32 %v1457
    %vm1464 = vmor %vm1462, %vm1463
    %v1465 = vsel %vm1464, %v1457, %v1461
    %v1466 = vand.u32 2147483647, %v1441
    %vm1467 = vcmp.eq.f32.partialorder %v1466, 8.507059e+37
    %v1468 = vand.u32 %v1441, 2147483648
    %v1469 = vor.u32 1.1754944e-38, %v1468
    %v1470 = vsel %vm1467, %v1469, %v1465
    %v1471 = vmul.f32 1.0, %v1470
    %v1472 = vmul.f32 %v1432, %v1456
    %v1473 = vmul.f32 %v1433, %v1471
    %s1474 = sld [smem:[#allocation9 + $0x19]]
    %v1475 = vstv %s1474
    %v1476 = vmul.f32 %v1472, %v1475
    %v1477 = vmul.f32 %v1473, %v1475
    %v1478 = vadd.f32 %v1424, %v1476
    %v1479 = vadd.f32 %v1425, %v1477
    %s1480 = sld [smem:[#allocation3 + $0x1a]]
    %v1481 = vstv %s1480
    %v1482 = vmul.f32 %v74, %v1481
    %v1483 = vmul.f32 %v75, %v1481
    %s1484 = sld [smem:[#allocation7 + $0x1a]]
    %v1485 = vstv %s1484
    %v1486 = vadd.f32 %v1482, %v1485
    %v1487 = vadd.f32 %v1483, %v1485
    %v1488 = vxor.u32 %v1486, 2147483648
    %v1489 = vxor.u32 %v1487, 2147483648
    %v1490 = vmul.f32 %v1488, 1.442695
    %v1491 = vpow.pop %v1490
    %v1492 = vmul.f32 %v1489, 1.442695
    %v1493 = vpow.pop %v1492
    %v1494 = vadd.f32 %v1491, 1.0
    %v1495 = vadd.f32 %v1493, 1.0
    %v1496 = vrcp.pop %v1494
    %v1497 = vmul.f32 %v1494, %v1496
    %v1498 = vsub.f32 1.0, %v1497
    %v1499 = vmul.f32 %v1496, %v1498
    %v1500 = vadd.f32 %v1496, %v1499
    %vm1501 = vweird.f32 %v1494
    %vm1502 = vweird.f32 %v1496
    %vm1503 = vmor %vm1501, %vm1502
    %v1504 = vsel %vm1503, %v1496, %v1500
    %v1505 = vand.u32 2147483647, %v1494
    %vm1506 = vcmp.eq.f32.partialorder %v1505, 8.507059e+37
    %v1507 = vand.u32 %v1494, 2147483648
    %v1508 = vor.u32 1.1754944e-38, %v1507
    %v1509 = vsel %vm1506, %v1508, %v1504
    %v1510 = vmul.f32 1.0, %v1509
    %v1511 = vrcp.pop %v1495
    %v1512 = vmul.f32 %v1495, %v1511
    %v1513 = vsub.f32 1.0, %v1512
    %v1514 = vmul.f32 %v1511, %v1513
    %v1515 = vadd.f32 %v1511, %v1514
    %vm1516 = vweird.f32 %v1495
    %vm1517 = vweird.f32 %v1511
    %vm1518 = vmor %vm1516, %vm1517
    %v1519 = vsel %vm1518, %v1511, %v1515
    %v1520 = vand.u32 2147483647, %v1495
    %vm1521 = vcmp.eq.f32.partialorder %v1520, 8.507059e+37
    %v1522 = vand.u32 %v1495, 2147483648
    %v1523 = vor.u32 1.1754944e-38, %v1522
    %v1524 = vsel %vm1521, %v1523, %v1519
    %v1525 = vmul.f32 1.0, %v1524
    %v1526 = vmul.f32 %v1486, %v1510
    %v1527 = vmul.f32 %v1487, %v1525
    %s1528 = sld [smem:[#allocation9 + $0x1a]]
    %v1529 = vstv %s1528
    %v1530 = vmul.f32 %v1526, %v1529
    %v1531 = vmul.f32 %v1527, %v1529
    %v1532 = vadd.f32 %v1478, %v1530
    %v1533 = vadd.f32 %v1479, %v1531
    %s1534 = sld [smem:[#allocation3 + $0x1b]]
    %v1535 = vstv %s1534
    %v1536 = vmul.f32 %v74, %v1535
    %v1537 = vmul.f32 %v75, %v1535
    %s1538 = sld [smem:[#allocation7 + $0x1b]]
    %v1539 = vstv %s1538
    %v1540 = vadd.f32 %v1536, %v1539
    %v1541 = vadd.f32 %v1537, %v1539
    %v1542 = vxor.u32 %v1540, 2147483648
    %v1543 = vxor.u32 %v1541, 2147483648
    %v1544 = vmul.f32 %v1542, 1.442695
    %v1545 = vpow.pop %v1544
    %v1546 = vmul.f32 %v1543, 1.442695
    %v1547 = vpow.pop %v1546
    %v1548 = vadd.f32 %v1545, 1.0
    %v1549 = vadd.f32 %v1547, 1.0
    %v1550 = vrcp.pop %v1548
    %v1551 = vmul.f32 %v1548, %v1550
    %v1552 = vsub.f32 1.0, %v1551
    %v1553 = vmul.f32 %v1550, %v1552
    %v1554 = vadd.f32 %v1550, %v1553
    %vm1555 = vweird.f32 %v1548
    %vm1556 = vweird.f32 %v1550
    %vm1557 = vmor %vm1555, %vm1556
    %v1558 = vsel %vm1557, %v1550, %v1554
    %v1559 = vand.u32 2147483647, %v1548
    %vm1560 = vcmp.eq.f32.partialorder %v1559, 8.507059e+37
    %v1561 = vand.u32 %v1548, 2147483648
    %v1562 = vor.u32 1.1754944e-38, %v1561
    %v1563 = vsel %vm1560, %v1562, %v1558
    %v1564 = vmul.f32 1.0, %v1563
    %v1565 = vrcp.pop %v1549
    %v1566 = vmul.f32 %v1549, %v1565
    %v1567 = vsub.f32 1.0, %v1566
    %v1568 = vmul.f32 %v1565, %v1567
    %v1569 = vadd.f32 %v1565, %v1568
    %vm1570 = vweird.f32 %v1549
    %vm1571 = vweird.f32 %v1565
    %vm1572 = vmor %vm1570, %vm1571
    %v1573 = vsel %vm1572, %v1565, %v1569
    %v1574 = vand.u32 2147483647, %v1549
    %vm1575 = vcmp.eq.f32.partialorder %v1574, 8.507059e+37
    %v1576 = vand.u32 %v1549, 2147483648
    %v1577 = vor.u32 1.1754944e-38, %v1576
    %v1578 = vsel %vm1575, %v1577, %v1573
    %v1579 = vmul.f32 1.0, %v1578
    %v1580 = vmul.f32 %v1540, %v1564
    %v1581 = vmul.f32 %v1541, %v1579
    %s1582 = sld [smem:[#allocation9 + $0x1b]]
    %v1583 = vstv %s1582
    %v1584 = vmul.f32 %v1580, %v1583
    %v1585 = vmul.f32 %v1581, %v1583
    %v1586 = vadd.f32 %v1532, %v1584
    %v1587 = vadd.f32 %v1533, %v1585
    %s1588 = sld [smem:[#allocation3 + $0x1c]]
    %v1589 = vstv %s1588
    %v1590 = vmul.f32 %v74, %v1589
    %v1591 = vmul.f32 %v75, %v1589
    %s1592 = sld [smem:[#allocation7 + $0x1c]]
    %v1593 = vstv %s1592
    %v1594 = vadd.f32 %v1590, %v1593
    %v1595 = vadd.f32 %v1591, %v1593
    %v1596 = vxor.u32 %v1594, 2147483648
    %v1597 = vxor.u32 %v1595, 2147483648
    %v1598 = vmul.f32 %v1596, 1.442695
    %v1599 = vpow.pop %v1598
    %v1600 = vmul.f32 %v1597, 1.442695
    %v1601 = vpow.pop %v1600
    %v1602 = vadd.f32 %v1599, 1.0
    %v1603 = vadd.f32 %v1601, 1.0
    %v1604 = vrcp.pop %v1602
    %v1605 = vmul.f32 %v1602, %v1604
    %v1606 = vsub.f32 1.0, %v1605
    %v1607 = vmul.f32 %v1604, %v1606
    %v1608 = vadd.f32 %v1604, %v1607
    %vm1609 = vweird.f32 %v1602
    %vm1610 = vweird.f32 %v1604
    %vm1611 = vmor %vm1609, %vm1610
    %v1612 = vsel %vm1611, %v1604, %v1608
    %v1613 = vand.u32 2147483647, %v1602
    %vm1614 = vcmp.eq.f32.partialorder %v1613, 8.507059e+37
    %v1615 = vand.u32 %v1602, 2147483648
    %v1616 = vor.u32 1.1754944e-38, %v1615
    %v1617 = vsel %vm1614, %v1616, %v1612
    %v1618 = vmul.f32 1.0, %v1617
    %v1619 = vrcp.pop %v1603
    %v1620 = vmul.f32 %v1603, %v1619
    %v1621 = vsub.f32 1.0, %v1620
    %v1622 = vmul.f32 %v1619, %v1621
    %v1623 = vadd.f32 %v1619, %v1622
    %vm1624 = vweird.f32 %v1603
    %vm1625 = vweird.f32 %v1619
    %vm1626 = vmor %vm1624, %vm1625
    %v1627 = vsel %vm1626, %v1619, %v1623
    %v1628 = vand.u32 2147483647, %v1603
    %vm1629 = vcmp.eq.f32.partialorder %v1628, 8.507059e+37
    %v1630 = vand.u32 %v1603, 2147483648
    %v1631 = vor.u32 1.1754944e-38, %v1630
    %v1632 = vsel %vm1629, %v1631, %v1627
    %v1633 = vmul.f32 1.0, %v1632
    %v1634 = vmul.f32 %v1594, %v1618
    %v1635 = vmul.f32 %v1595, %v1633
    %s1636 = sld [smem:[#allocation9 + $0x1c]]
    %v1637 = vstv %s1636
    %v1638 = vmul.f32 %v1634, %v1637
    %v1639 = vmul.f32 %v1635, %v1637
    %v1640 = vadd.f32 %v1586, %v1638
    %v1641 = vadd.f32 %v1587, %v1639
    %s1642 = sld [smem:[#allocation3 + $0x1d]]
    %v1643 = vstv %s1642
    %v1644 = vmul.f32 %v74, %v1643
    %v1645 = vmul.f32 %v75, %v1643
    %s1646 = sld [smem:[#allocation7 + $0x1d]]
    %v1647 = vstv %s1646
    %v1648 = vadd.f32 %v1644, %v1647
    %v1649 = vadd.f32 %v1645, %v1647
    %v1650 = vxor.u32 %v1648, 2147483648
    %v1651 = vxor.u32 %v1649, 2147483648
    %v1652 = vmul.f32 %v1650, 1.442695
    %v1653 = vpow.pop %v1652
    %v1654 = vmul.f32 %v1651, 1.442695
    %v1655 = vpow.pop %v1654
    %v1656 = vadd.f32 %v1653, 1.0
    %v1657 = vadd.f32 %v1655, 1.0
    %v1658 = vrcp.pop %v1656
    %v1659 = vmul.f32 %v1656, %v1658
    %v1660 = vsub.f32 1.0, %v1659
    %v1661 = vmul.f32 %v1658, %v1660
    %v1662 = vadd.f32 %v1658, %v1661
    %vm1663 = vweird.f32 %v1656
    %vm1664 = vweird.f32 %v1658
    %vm1665 = vmor %vm1663, %vm1664
    %v1666 = vsel %vm1665, %v1658, %v1662
    %v1667 = vand.u32 2147483647, %v1656
    %vm1668 = vcmp.eq.f32.partialorder %v1667, 8.507059e+37
    %v1669 = vand.u32 %v1656, 2147483648
    %v1670 = vor.u32 1.1754944e-38, %v1669
    %v1671 = vsel %vm1668, %v1670, %v1666
    %v1672 = vmul.f32 1.0, %v1671
    %v1673 = vrcp.pop %v1657
    %v1674 = vmul.f32 %v1657, %v1673
    %v1675 = vsub.f32 1.0, %v1674
    %v1676 = vmul.f32 %v1673, %v1675
    %v1677 = vadd.f32 %v1673, %v1676
    %vm1678 = vweird.f32 %v1657
    %vm1679 = vweird.f32 %v1673
    %vm1680 = vmor %vm1678, %vm1679
    %v1681 = vsel %vm1680, %v1673, %v1677
    %v1682 = vand.u32 2147483647, %v1657
    %vm1683 = vcmp.eq.f32.partialorder %v1682, 8.507059e+37
    %v1684 = vand.u32 %v1657, 2147483648
    %v1685 = vor.u32 1.1754944e-38, %v1684
    %v1686 = vsel %vm1683, %v1685, %v1681
    %v1687 = vmul.f32 1.0, %v1686
    %v1688 = vmul.f32 %v1648, %v1672
    %v1689 = vmul.f32 %v1649, %v1687
    %s1690 = sld [smem:[#allocation9 + $0x1d]]
    %v1691 = vstv %s1690
    %v1692 = vmul.f32 %v1688, %v1691
    %v1693 = vmul.f32 %v1689, %v1691
    %v1694 = vadd.f32 %v1640, %v1692
    %v1695 = vadd.f32 %v1641, %v1693
    %s1696 = sld [smem:[#allocation3 + $0x1e]]
    %v1697 = vstv %s1696
    %v1698 = vmul.f32 %v74, %v1697
    %v1699 = vmul.f32 %v75, %v1697
    %s1700 = sld [smem:[#allocation7 + $0x1e]]
    %v1701 = vstv %s1700
    %v1702 = vadd.f32 %v1698, %v1701
    %v1703 = vadd.f32 %v1699, %v1701
    %v1704 = vxor.u32 %v1702, 2147483648
    %v1705 = vxor.u32 %v1703, 2147483648
    %v1706 = vmul.f32 %v1704, 1.442695
    %v1707 = vpow.pop %v1706
    %v1708 = vmul.f32 %v1705, 1.442695
    %v1709 = vpow.pop %v1708
    %v1710 = vadd.f32 %v1707, 1.0
    %v1711 = vadd.f32 %v1709, 1.0
    %v1712 = vrcp.pop %v1710
    %v1713 = vmul.f32 %v1710, %v1712
    %v1714 = vsub.f32 1.0, %v1713
    %v1715 = vmul.f32 %v1712, %v1714
    %v1716 = vadd.f32 %v1712, %v1715
    %vm1717 = vweird.f32 %v1710
    %vm1718 = vweird.f32 %v1712
    %vm1719 = vmor %vm1717, %vm1718
    %v1720 = vsel %vm1719, %v1712, %v1716
    %v1721 = vand.u32 2147483647, %v1710
    %vm1722 = vcmp.eq.f32.partialorder %v1721, 8.507059e+37
    %v1723 = vand.u32 %v1710, 2147483648
    %v1724 = vor.u32 1.1754944e-38, %v1723
    %v1725 = vsel %vm1722, %v1724, %v1720
    %v1726 = vmul.f32 1.0, %v1725
    %v1727 = vrcp.pop %v1711
    %v1728 = vmul.f32 %v1711, %v1727
    %v1729 = vsub.f32 1.0, %v1728
    %v1730 = vmul.f32 %v1727, %v1729
    %v1731 = vadd.f32 %v1727, %v1730
    %vm1732 = vweird.f32 %v1711
    %vm1733 = vweird.f32 %v1727
    %vm1734 = vmor %vm1732, %vm1733
    %v1735 = vsel %vm1734, %v1727, %v1731
    %v1736 = vand.u32 2147483647, %v1711
    %vm1737 = vcmp.eq.f32.partialorder %v1736, 8.507059e+37
    %v1738 = vand.u32 %v1711, 2147483648
    %v1739 = vor.u32 1.1754944e-38, %v1738
    %v1740 = vsel %vm1737, %v1739, %v1735
    %v1741 = vmul.f32 1.0, %v1740
    %v1742 = vmul.f32 %v1702, %v1726
    %v1743 = vmul.f32 %v1703, %v1741
    %s1744 = sld [smem:[#allocation9 + $0x1e]]
    %v1745 = vstv %s1744
    %v1746 = vmul.f32 %v1742, %v1745
    %v1747 = vmul.f32 %v1743, %v1745
    %v1748 = vadd.f32 %v1694, %v1746
    %v1749 = vadd.f32 %v1695, %v1747
    %s1750 = sld [smem:[#allocation3 + $0x1f]]
    %v1751 = vstv %s1750
    %v1752 = vmul.f32 %v74, %v1751
    %v1753 = vmul.f32 %v75, %v1751
    %s1754 = sld [smem:[#allocation7 + $0x1f]]
    %v1755 = vstv %s1754
    %v1756 = vadd.f32 %v1752, %v1755
    %v1757 = vadd.f32 %v1753, %v1755
    %v1758 = vxor.u32 %v1756, 2147483648
    %v1759 = vxor.u32 %v1757, 2147483648
    %v1760 = vmul.f32 %v1758, 1.442695
    %v1761 = vpow.pop %v1760
    %v1762 = vmul.f32 %v1759, 1.442695
    %v1763 = vpow.pop %v1762
    %v1764 = vadd.f32 %v1761, 1.0
    %v1765 = vadd.f32 %v1763, 1.0
    %v1766 = vrcp.pop %v1764
    %v1767 = vmul.f32 %v1764, %v1766
    %v1768 = vsub.f32 1.0, %v1767
    %v1769 = vmul.f32 %v1766, %v1768
    %v1770 = vadd.f32 %v1766, %v1769
    %vm1771 = vweird.f32 %v1764
    %vm1772 = vweird.f32 %v1766
    %vm1773 = vmor %vm1771, %vm1772
    %v1774 = vsel %vm1773, %v1766, %v1770
    %v1775 = vand.u32 2147483647, %v1764
    %vm1776 = vcmp.eq.f32.partialorder %v1775, 8.507059e+37
    %v1777 = vand.u32 %v1764, 2147483648
    %v1778 = vor.u32 1.1754944e-38, %v1777
    %v1779 = vsel %vm1776, %v1778, %v1774
    %v1780 = vmul.f32 1.0, %v1779
    %v1781 = vrcp.pop %v1765
    %v1782 = vmul.f32 %v1765, %v1781
    %v1783 = vsub.f32 1.0, %v1782
    %v1784 = vmul.f32 %v1781, %v1783
    %v1785 = vadd.f32 %v1781, %v1784
    %vm1786 = vweird.f32 %v1765
    %vm1787 = vweird.f32 %v1781
    %vm1788 = vmor %vm1786, %vm1787
    %v1789 = vsel %vm1788, %v1781, %v1785
    %v1790 = vand.u32 2147483647, %v1765
    %vm1791 = vcmp.eq.f32.partialorder %v1790, 8.507059e+37
    %v1792 = vand.u32 %v1765, 2147483648
    %v1793 = vor.u32 1.1754944e-38, %v1792
    %v1794 = vsel %vm1791, %v1793, %v1789
    %v1795 = vmul.f32 1.0, %v1794
    %v1796 = vmul.f32 %v1756, %v1780
    %v1797 = vmul.f32 %v1757, %v1795
    %s1798 = sld [smem:[#allocation9 + $0x1f]]
    %v1799 = vstv %s1798
    %v1800 = vmul.f32 %v1796, %v1799
    %v1801 = vmul.f32 %v1797, %v1799
    %v1802 = vadd.f32 %v1748, %v1800
    %v1803 = vadd.f32 %v1749, %v1801
    %s1804 = sld [smem:[#allocation2]]
    %v1805 = vstv %s1804
    %v1806 = vadd.f32 %v1802, %v1805
    %v1807 = vadd.f32 %v1803, %v1805
    %1808 = vst [vmem:[#allocation11] sm:$0xff] %v1806
    %1809 = vst [vmem:[#allocation11 + $0x8] sm:$0xff] %v1807
    // Predicated region
    $region38: #{tpu_custom_call.1} parent=1 // pred_check
      _
    $region39: #{tpu_custom_call.1} parent=1 // pred_check_branch
      %1811 = sbr.rel (0) target = $region41
    $region40: #{tpu_custom_call.1} parent=1 // pred_region
      %1813 = vsyncadd [#allocation5], 0
      %s1814 = sshll.u32 [#allocation11], 4
      %s1815 = int_to_ptr.vmem [resolvable:$true] %s1814
      %s1816 = sshll.u32 %s5, 4
      %s1817 = int_to_ptr.hbm [resolvable:$true] %s1816
      %1822 = dma.vmem_to_hbm [thread:$0]  %s1815, 256, %s1817, [#allocation5], 128, 128, 8
    $region41: #{tpu_custom_call.1} parent=1 // pred_fallthru
      _
    // Predicated region
    $region42: #{tpu_custom_call.1} parent=1 // pred_check
      _
    $region43: #{tpu_custom_call.1} parent=1 // pred_check_branch
      %1824 = sbr.rel (0) target = $region45
    $region44: #{tpu_custom_call.1} parent=1 // pred_region
      %1826 = dma.done [#allocation5], 256
    $region45: #{tpu_custom_call.1} parent=1 // pred_fallthru
      _
    %1827 = vsyncpa [#allocation4], 1
    %1828 = vsyncpa [#allocation5], 1
    %1829 = vsyncpa [#allocation6], 1
    %1830 = vsyncpa [#allocation8], 1

</llo_original>
